<compile_context>
chip_gen: v7x
topology: tpu7x:2x2x1
jax: 0.10.0
libtpu: 0.0.40
codegen_flags: <defaults>
</compile_context>

<pallas_src>
import functools

import jax
import jax.numpy as jnp
from jax.experimental import pallas as pl
from jax.experimental.pallas import tpu as pltpu


def char_bilstm_kernel(xx_ref, lens_ref, wih_ref, whh_ref, b_ref, out_ref, gx_sc):
    """Fused bidirectional LSTM over one tile of `tile_n` words.

    xx_ref:   (T, tile_n, 2D) bf16  time-major [x_t | x_{T-1-t}] char embeddings
    lens_ref: (tile_n, 1)     int32 word lengths
    wih_ref:  (2D, 8H) bf16   block-structured input projection (fused gate cols)
    whh_ref:  (2H, 8H) bf16   block-diagonal recurrent weights (fused gate cols)
    b_ref:    (1, 8H)  f32    fused bias
    out_ref:  (tile_n, 2H) f32 final hidden states [h_fwd | h_bwd]
    gx_sc:    (T, tile_n, 8H) bf16 VMEM scratch, time-major hoisted projection
    Fused gate column order: [i_f, i_b, f_f, f_b, o_f, o_b, g_f, g_b].
    """
    T, tn, G8 = gx_sc.shape
    H2 = whh_ref.shape[0]          # 2H (fused fwd|bwd state width)
    H = H2 // 2
    H6 = 6 * H

    wih = wih_ref[...]             # (2D, 8H) bf16
    b = b_ref[...]                 # (1, 8H)  f32

    # ---- Hoisted input projection (off the serial path) ---------------------
    # Written time-major & step-aligned: gx_sc[t] already contains the fwd
    # contribution from x_t and the bwd contribution from x_{T-1-t}.
    for t in range(T):
        proj = jnp.dot(xx_ref[t], wih, preferred_element_type=jnp.float32) + b
        gx_sc[t] = proj.astype(gx_sc.dtype)

    lens = lens_ref[...]           # (tn, 1) int32
    whh = whh_ref[...]             # (2H, 8H) bf16 block-diagonal

    h_cat = jnp.zeros((tn, H2), jnp.float32)   # [h_f | h_b]
    c_cat = jnp.zeros((tn, H2), jnp.float32)   # [c_f | c_b]

    # ---- Sequential recurrence, fully unrolled (T = c_maxlen, small & static)
    # Per step: 1 contiguous (tn, 8H) gx load, 1 fused MXU matmul,
    # 1 sigmoid(6H) + 2 tanh(2H), a handful of VPU mults and 2 selects.
    for t in range(T):
        tb = T - 1 - t
        g = gx_sc[t] + jnp.dot(h_cat.astype(whh.dtype), whh,
                               preferred_element_type=jnp.float32)    # (tn, 8H)
        sig = jax.nn.sigmoid(g[:, 0:H6])        # [i_f,i_b | f_f,f_b | o_f,o_b]
        g_g = jnp.tanh(g[:, H6:G8])             # [g_f | g_b]
        c_new = sig[:, H2:2 * H2] * c_cat + sig[:, 0:H2] * g_g
        h_new = sig[:, 2 * H2:3 * H2] * jnp.tanh(c_new)
        # packed-sequence emulation: freeze state on padded char positions.
        step = jnp.concatenate([jnp.full((1, H), t, jnp.int32),
                                jnp.full((1, H), tb, jnp.int32)], axis=1)
        live = step < lens                      # (tn, 2H) bool
        h_cat = jnp.where(live, h_new, h_cat)
        c_cat = jnp.where(live, c_new, c_cat)

    out_ref[...] = h_cat                        # single (tn, 2H) store [h_f|h_b]


# ---------------------------------------------------------------------------
# Wrapper: weight permutation, time-major activation prep, tiling.
# ---------------------------------------------------------------------------
def _gate_cols(w, H):
    # PyTorch LSTM gate order along the last axis: [i, f, g, o].
    return w[..., 0:H], w[..., H:2 * H], w[..., 2 * H:3 * H], w[..., 3 * H:4 * H]


def _round_up(x, m):
    return -(-x // m) * m


def _vmem_bytes(tile_n, T, d, H):
    lane = lambda n: _round_up(max(n, 1), 128)
    sub = lambda n: _round_up(max(n, 1), 8)
    gx = T * tile_n * lane(8 * H) * 2                 # bf16 scratch
    xx = 2 * T * tile_n * lane(2 * d) * 2             # double-buffered x tile
    ln = 2 * tile_n * lane(1) * 4
    wih = 2 * sub(2 * d) * lane(8 * H) * 2
    whh = 2 * sub(2 * H) * lane(8 * H) * 2
    bb = 2 * sub(1) * lane(8 * H) * 4
    out = 2 * tile_n * lane(2 * H) * 4
    return gx + xx + ln + wih + whh + bb + out


def char_lstm_encoding(inputs, lens, params, *, tile_n=128):
    """Pallas implementation of CharLSTMEncoding.forward.

    inputs: (bs, t_maxlen, c_maxlen, char_dim) float32
    lens:   (bs, t_maxlen) int32
    returns (bs, t_maxlen, 2*H) float32
    """
    assert tile_n % 8 == 0 and tile_n > 0
    bs, t_max, c_max, d = inputs.shape
    H = params["whh_f"].shape[0]
    N = bs * t_max

    # ---- tile sizing --------------------------------------------------------
    # >= 2 grid tiles when possible so v7x's two TensorCores both get work.
    if N >= 16:
        tile_n = min(tile_n, _round_up(pl.cdiv(N, 2), 8))
    tile_n = max(8, tile_n)
    # Shrink until the VMEM footprint fits a conservative budget (v7x: 64 MiB).
    vmem_budget = 40 * 1024 * 1024
    while tile_n > 8 and _vmem_bytes(tile_n, c_max, d, H) > vmem_budget:
        tile_n = max(8, _round_up(tile_n // 2, 8))
    n_pad = _round_up(N, tile_n)

    # ---- activations: time-major, step-aligned [x_t | x_{T-1-t}] ------------
    x = inputs.reshape(N, c_max, d)
    xx = jnp.concatenate([x, x[:, ::-1, :]], axis=-1)              # (N, T, 2D)
    l = lens.reshape(N, 1).astype(jnp.int32)
    if n_pad != N:
        xx = jnp.pad(xx, ((0, n_pad - N), (0, 0), (0, 0)))
        l = jnp.pad(l, ((0, n_pad - N), (0, 0)))                   # padded rows: len=0
    xx = jnp.transpose(xx, (1, 0, 2)).astype(jnp.bfloat16)         # (T, n_pad, 2D)

    # ---- weights: fused gate order [i_f,i_b, f_f,f_b, o_f,o_b, g_f,g_b] -----
    f32 = jnp.float32
    i_f, f_f, g_f, o_f = _gate_cols(params["wih_f"].astype(f32), H)
    i_b, f_b, g_b, o_b = _gate_cols(params["wih_b"].astype(f32), H)
    Zd = jnp.zeros((d, H), f32)
    wih = jnp.concatenate([
        jnp.concatenate([i_f, Zd, f_f, Zd, o_f, Zd, g_f, Zd], axis=1),  # rows: x_t
        jnp.concatenate([Zd, i_b, Zd, f_b, Zd, o_b, Zd, g_b], axis=1),  # rows: x_{T-1-t}
    ], axis=0).astype(jnp.bfloat16)                                      # (2D, 8H)

    ri_f, rf_f, rg_f, ro_f = _gate_cols(params["whh_f"].astype(f32), H)
    ri_b, rf_b, rg_b, ro_b = _gate_cols(params["whh_b"].astype(f32), H)
    Zh = jnp.zeros((H, H), f32)
    whh = jnp.concatenate([
        jnp.concatenate([ri_f, Zh, rf_f, Zh, ro_f, Zh, rg_f, Zh], axis=1),  # rows: h_f
        jnp.concatenate([Zh, ri_b, Zh, rf_b, Zh, ro_b, Zh, rg_b], axis=1),  # rows: h_b
    ], axis=0).astype(jnp.bfloat16)                                          # (2H, 8H)

    bi_f, bf_f, bg_f, bo_f = _gate_cols(params["b_f"].astype(f32), H)
    bi_b, bf_b, bg_b, bo_b = _gate_cols(params["b_b"].astype(f32), H)
    b = jnp.concatenate([bi_f, bi_b, bf_f, bf_b, bo_f, bo_b, bg_f, bg_b],
                        axis=1)                                              # (1, 8H) f32

    grid = (n_pad // tile_n,)
    vmem_limit = int(min(64 * 1024 * 1024,
                         max(32 * 1024 * 1024,
                             2 * _vmem_bytes(tile_n, c_max, d, H))))

    out = pl.pallas_call(
        char_bilstm_kernel,
        out_shape=jax.ShapeDtypeStruct((n_pad, 2 * H), jnp.float32),
        grid_spec=pltpu.PrefetchScalarGridSpec(
            num_scalar_prefetch=0,
            grid=grid,
            in_specs=[
                pl.BlockSpec((c_max, tile_n, 2 * d), lambda i: (0, i, 0)),
                pl.BlockSpec((tile_n, 1), lambda i: (i, 0)),
                pl.BlockSpec((2 * d, 8 * H), lambda i: (0, 0)),
                pl.BlockSpec((2 * H, 8 * H), lambda i: (0, 0)),
                pl.BlockSpec((1, 8 * H), lambda i: (0, 0)),
            ],
            out_specs=pl.BlockSpec((tile_n, 2 * H), lambda i: (i, 0)),
            scratch_shapes=[pltpu.VMEM((c_max, tile_n, 8 * H), jnp.bfloat16)],
        ),
        compiler_params=pltpu.CompilerParams(
            dimension_semantics=("parallel",),
            vmem_limit_bytes=vmem_limit),
    )(xx, l, wih, whh, b)

    return out[:N].reshape(bs, t_max, 2 * H)


# ---------------------------------------------------------------------------
# Pure-JAX references (PyTorch gate order, separate directions) for checks.
# ---------------------------------------------------------------------------
def char_lstm_encoding_ref(inputs, lens, params, *, mirror_kernel_precision=True):
    bs, t_max, c_max, d = inputs.shape
    H = params["whh_f"].shape[0]
    N = bs * t_max

    act_dt = jnp.bfloat16 if mirror_kernel_precision else jnp.float32
    gx_dt = jnp.bfloat16 if mirror_kernel_precision else jnp.float32

    x = inputs.reshape(N, c_max, d).astype(act_dt)
    l = lens.reshape(N, 1)
    wih_f = params["wih_f"].astype(act_dt); wih_b = params["wih_b"].astype(act_dt)
    whh_f = params["whh_f"].astype(act_dt); whh_b = params["whh_b"].astype(act_dt)
    b_f = params["b_f"].astype(jnp.float32); b_b = params["b_b"].astype(jnp.float32)

    gx_f = (jnp.einsum("ntd,dh->nth", x, wih_f,
                       preferred_element_type=jnp.float32) + b_f).astype(gx_dt)
    gx_b = (jnp.einsum("ntd,dh->nth", x, wih_b,
                       preferred_element_type=jnp.float32) + b_b).astype(gx_dt)

    def cell(g, h, c, live):
        i = jax.nn.sigmoid(g[:, 0:H]); f = jax.nn.sigmoid(g[:, H:2 * H])
        gg = jnp.tanh(g[:, 2 * H:3 * H]); o = jax.nn.sigmoid(g[:, 3 * H:4 * H])
        c_new = f * c + i * gg
        h_new = o * jnp.tanh(c_new)
        return jnp.where(live, h_new, h), jnp.where(live, c_new, c)

    zero = jnp.zeros((N, H), jnp.float32)
    h_f, c_f, h_b, c_b = zero, zero, zero, zero
    for t in range(c_max):
        tb = c_max - 1 - t
        gf = gx_f[:, t].astype(jnp.float32) + jnp.dot(
            h_f.astype(act_dt), whh_f, preferred_element_type=jnp.float32)
        gb = gx_b[:, tb].astype(jnp.float32) + jnp.dot(
            h_b.astype(act_dt), whh_b, preferred_element_type=jnp.float32)
        h_f, c_f = cell(gf, h_f, c_f, t < l)
        h_b, c_b = cell(gb, h_b, c_b, tb < l)

    return jnp.concatenate([h_f, h_b], axis=-1).reshape(bs, t_max, 2 * H)


def init_params(key, char_dim, hidden_dim):
    """nn.LSTM-shaped params (bidirectional, 1 layer); hidden_dim = 2*H total.

    Stored transposed: W_ih:(D,4H), W_hh:(H,4H), bias:(1,4H) (b_ih+b_hh summed),
    PyTorch gate order [i, f, g, o], uniform(-1/sqrt(H), 1/sqrt(H)).
    """
    H = hidden_dim // 2
    s = 1.0 / (H ** 0.5)
    ks = jax.random.split(key, 6)
    u = lambda k, shape: jax.random.uniform(k, shape, jnp.float32, -s, s)
    return {
        "wih_f": u(ks[0], (char_dim, 4 * H)),
        "whh_f": u(ks[1], (H, 4 * H)),
        "b_f":   u(ks[2], (1, 4 * H)),
        "wih_b": u(ks[3], (char_dim, 4 * H)),
        "whh_b": u(ks[4], (H, 4 * H)),
        "b_b":   u(ks[5], (1, 4 * H)),
    }


if __name__ == "__main__":
    key = jax.random.PRNGKey(0)
    bs, t_maxlen, c_maxlen, char_dim = 2, 8, 8, 16
    hidden_dim = 32  # bidirectional: H = 16 per direction

    k_x, k_l, k_p = jax.random.split(key, 3)
    inputs = jax.random.normal(k_x, (bs, t_maxlen, c_maxlen, char_dim), jnp.float32)
    lens = jax.random.randint(k_l, (bs, t_maxlen), 1, c_maxlen + 1, jnp.int32)
    lens = lens.at[0, 0].set(1).at[0, 1].set(c_maxlen)   # cover both extremes
    params = init_params(k_p, char_dim, hidden_dim)

    run = jax.jit(functools.partial(char_lstm_encoding, tile_n=128))
    out = jax.block_until_ready(run(inputs, lens, params))
    assert out.shape == (bs, t_maxlen, hidden_dim), out.shape

    ref = char_lstm_encoding_ref(inputs, lens, params, mirror_kernel_precision=True)
    err = float(jnp.max(jnp.abs(out - ref)))
    assert err < 5e-3, f"mixed-precision ref mismatch: {err}"

    ref32 = char_lstm_encoding_ref(inputs, lens, params, mirror_kernel_precision=False)
    err32 = float(jnp.max(jnp.abs(out - ref32)))
    assert err32 < 5e-2, f"f32 ref drift too large: {err32}"

    print("KERNEL_OK")
</pallas_src>

<mosaic_0001>
module attributes {stable_mosaic.version = 11 : i64} {
  func.func @char_bilstm_kernel(%arg0: i32, %arg1: memref<8x8x32xbf16, #tpu.memory_space<vmem>>, %arg2: memref<8x1xi32, #tpu.memory_space<vmem>>, %arg3: memref<32x128xbf16, #tpu.memory_space<vmem>>, %arg4: memref<32x128xbf16, #tpu.memory_space<vmem>>, %arg5: memref<1x128xf32, #tpu.memory_space<vmem>>, %arg6: memref<8x32xf32, #tpu.memory_space<vmem>>, %arg7: memref<8x8x128xbf16, #tpu.memory_space<vmem>>) attributes {dimension_semantics = [#tpu.dimension_semantics<parallel>], iteration_bounds = array<i64: 2>, scalar_prefetch = 0 : i64, scratch_operands = 1 : i64, tpu.core_type = #tpu.core_type<tc>, window_params = [{transform_indices = @transform_0, window_bounds = array<i64: 8, 8, 32>}, {transform_indices = @transform_1, window_bounds = array<i64: 8, 1>}, {pipeline_mode = #tpu.pipeline_mode<synchronous>, transform_indices = @transform_2, window_bounds = array<i64: 32, 128>}, {pipeline_mode = #tpu.pipeline_mode<synchronous>, transform_indices = @transform_3, window_bounds = array<i64: 32, 128>}, {pipeline_mode = #tpu.pipeline_mode<synchronous>, transform_indices = @transform_4, window_bounds = array<i64: 1, 128>}, {transform_indices = @transform_5, window_bounds = array<i64: 8, 32>}]} {
    %c0 = arith.constant 0 : index
    %c0_0 = arith.constant 0 : index
    %0 = vector.load %arg3[%c0, %c0_0] : memref<32x128xbf16, #tpu.memory_space<vmem>>, vector<32x128xbf16>
    %c0_1 = arith.constant 0 : index
    %c0_2 = arith.constant 0 : index
    %1 = vector.load %arg5[%c0_1, %c0_2] : memref<1x128xf32, #tpu.memory_space<vmem>>, vector<1x128xf32>
    %c0_3 = arith.constant 0 : index
    %c0_4 = arith.constant 0 : index
    %c0_5 = arith.constant 0 : index
    %2 = vector.load %arg1[%c0_3, %c0_4, %c0_5] : memref<8x8x32xbf16, #tpu.memory_space<vmem>>, vector<1x8x32xbf16>
    %3 = vector.shape_cast %2 : vector<1x8x32xbf16> to vector<8x32xbf16>
    %cst = arith.constant dense<0.000000e+00> : vector<8x128xf32>
    %4 = tpu.matmul %3, %0, %cst {dimension_numbers = #tpu.dot_dimension_numbers<[1], [0], [0], [1], [0, 0, 1, 1], [], []>} : vector<8x32xbf16>, vector<32x128xbf16>, vector<8x128xf32> -> vector<8x128xf32>
    %5 = vector.broadcast %1 : vector<1x128xf32> to vector<8x128xf32>
    %6 = arith.addf %4, %5 : vector<8x128xf32>
    %7 = arith.truncf %6 : vector<8x128xf32> to vector<8x128xbf16>
    %c0_6 = arith.constant 0 : index
    %c0_7 = arith.constant 0 : index
    %c0_8 = arith.constant 0 : index
    %8 = vector.load %arg7[%c0_6, %c0_7, %c0_8] : memref<8x8x128xbf16, #tpu.memory_space<vmem>>, vector<1x8x128xbf16>
    %9 = vector.shape_cast %8 : vector<1x8x128xbf16> to vector<8x128xbf16>
    %10 = vector.shape_cast %7 : vector<8x128xbf16> to vector<1x8x128xbf16>
    tpu.vector_store %arg7[%c0_6, %c0_7, %c0_8], %10 {strides = array<i32>} : memref<8x8x128xbf16, #tpu.memory_space<vmem>>, vector<1x8x128xbf16>,
    %c1 = arith.constant 1 : index
    %c0_9 = arith.constant 0 : index
    %c0_10 = arith.constant 0 : index
    %11 = vector.load %arg1[%c1, %c0_9, %c0_10] : memref<8x8x32xbf16, #tpu.memory_space<vmem>>, vector<1x8x32xbf16>
    %12 = vector.shape_cast %11 : vector<1x8x32xbf16> to vector<8x32xbf16>
    %cst_11 = arith.constant dense<0.000000e+00> : vector<8x128xf32>
    %13 = tpu.matmul %12, %0, %cst_11 {dimension_numbers = #tpu.dot_dimension_numbers<[1], [0], [0], [1], [0, 0, 1, 1], [], []>} : vector<8x32xbf16>, vector<32x128xbf16>, vector<8x128xf32> -> vector<8x128xf32>
    %14 = vector.broadcast %1 : vector<1x128xf32> to vector<8x128xf32>
    %15 = arith.addf %13, %14 : vector<8x128xf32>
    %16 = arith.truncf %15 : vector<8x128xf32> to vector<8x128xbf16>
    %c1_12 = arith.constant 1 : index
    %c0_13 = arith.constant 0 : index
    %c0_14 = arith.constant 0 : index
    %17 = vector.load %arg7[%c1_12, %c0_13, %c0_14] : memref<8x8x128xbf16, #tpu.memory_space<vmem>>, vector<1x8x128xbf16>
    %18 = vector.shape_cast %17 : vector<1x8x128xbf16> to vector<8x128xbf16>
    %19 = vector.shape_cast %16 : vector<8x128xbf16> to vector<1x8x128xbf16>
    tpu.vector_store %arg7[%c1_12, %c0_13, %c0_14], %19 {strides = array<i32>} : memref<8x8x128xbf16, #tpu.memory_space<vmem>>, vector<1x8x128xbf16>,
    %c2 = arith.constant 2 : index
    %c0_15 = arith.constant 0 : index
    %c0_16 = arith.constant 0 : index
    %20 = vector.load %arg1[%c2, %c0_15, %c0_16] : memref<8x8x32xbf16, #tpu.memory_space<vmem>>, vector<1x8x32xbf16>
    %21 = vector.shape_cast %20 : vector<1x8x32xbf16> to vector<8x32xbf16>
    %cst_17 = arith.constant dense<0.000000e+00> : vector<8x128xf32>
    %22 = tpu.matmul %21, %0, %cst_17 {dimension_numbers = #tpu.dot_dimension_numbers<[1], [0], [0], [1], [0, 0, 1, 1], [], []>} : vector<8x32xbf16>, vector<32x128xbf16>, vector<8x128xf32> -> vector<8x128xf32>
    %23 = vector.broadcast %1 : vector<1x128xf32> to vector<8x128xf32>
    %24 = arith.addf %22, %23 : vector<8x128xf32>
    %25 = arith.truncf %24 : vector<8x128xf32> to vector<8x128xbf16>
    %c2_18 = arith.constant 2 : index
    %c0_19 = arith.constant 0 : index
    %c0_20 = arith.constant 0 : index
    %26 = vector.load %arg7[%c2_18, %c0_19, %c0_20] : memref<8x8x128xbf16, #tpu.memory_space<vmem>>, vector<1x8x128xbf16>
    %27 = vector.shape_cast %26 : vector<1x8x128xbf16> to vector<8x128xbf16>
    %28 = vector.shape_cast %25 : vector<8x128xbf16> to vector<1x8x128xbf16>
    tpu.vector_store %arg7[%c2_18, %c0_19, %c0_20], %28 {strides = array<i32>} : memref<8x8x128xbf16, #tpu.memory_space<vmem>>, vector<1x8x128xbf16>,
    %c3 = arith.constant 3 : index
    %c0_21 = arith.constant 0 : index
    %c0_22 = arith.constant 0 : index
    %29 = vector.load %arg1[%c3, %c0_21, %c0_22] : memref<8x8x32xbf16, #tpu.memory_space<vmem>>, vector<1x8x32xbf16>
    %30 = vector.shape_cast %29 : vector<1x8x32xbf16> to vector<8x32xbf16>
    %cst_23 = arith.constant dense<0.000000e+00> : vector<8x128xf32>
    %31 = tpu.matmul %30, %0, %cst_23 {dimension_numbers = #tpu.dot_dimension_numbers<[1], [0], [0], [1], [0, 0, 1, 1], [], []>} : vector<8x32xbf16>, vector<32x128xbf16>, vector<8x128xf32> -> vector<8x128xf32>
    %32 = vector.broadcast %1 : vector<1x128xf32> to vector<8x128xf32>
    %33 = arith.addf %31, %32 : vector<8x128xf32>
    %34 = arith.truncf %33 : vector<8x128xf32> to vector<8x128xbf16>
    %c3_24 = arith.constant 3 : index
    %c0_25 = arith.constant 0 : index
    %c0_26 = arith.constant 0 : index
    %35 = vector.load %arg7[%c3_24, %c0_25, %c0_26] : memref<8x8x128xbf16, #tpu.memory_space<vmem>>, vector<1x8x128xbf16>
    %36 = vector.shape_cast %35 : vector<1x8x128xbf16> to vector<8x128xbf16>
    %37 = vector.shape_cast %34 : vector<8x128xbf16> to vector<1x8x128xbf16>
    tpu.vector_store %arg7[%c3_24, %c0_25, %c0_26], %37 {strides = array<i32>} : memref<8x8x128xbf16, #tpu.memory_space<vmem>>, vector<1x8x128xbf16>,
    %c4 = arith.constant 4 : index
    %c0_27 = arith.constant 0 : index
    %c0_28 = arith.constant 0 : index
    %38 = vector.load %arg1[%c4, %c0_27, %c0_28] : memref<8x8x32xbf16, #tpu.memory_space<vmem>>, vector<1x8x32xbf16>
    %39 = vector.shape_cast %38 : vector<1x8x32xbf16> to vector<8x32xbf16>
    %cst_29 = arith.constant dense<0.000000e+00> : vector<8x128xf32>
    %40 = tpu.matmul %39, %0, %cst_29 {dimension_numbers = #tpu.dot_dimension_numbers<[1], [0], [0], [1], [0, 0, 1, 1], [], []>} : vector<8x32xbf16>, vector<32x128xbf16>, vector<8x128xf32> -> vector<8x128xf32>
    %41 = vector.broadcast %1 : vector<1x128xf32> to vector<8x128xf32>
    %42 = arith.addf %40, %41 : vector<8x128xf32>
    %43 = arith.truncf %42 : vector<8x128xf32> to vector<8x128xbf16>
    %c4_30 = arith.constant 4 : index
    %c0_31 = arith.constant 0 : index
    %c0_32 = arith.constant 0 : index
    %44 = vector.load %arg7[%c4_30, %c0_31, %c0_32] : memref<8x8x128xbf16, #tpu.memory_space<vmem>>, vector<1x8x128xbf16>
    %45 = vector.shape_cast %44 : vector<1x8x128xbf16> to vector<8x128xbf16>
    %46 = vector.shape_cast %43 : vector<8x128xbf16> to vector<1x8x128xbf16>
    tpu.vector_store %arg7[%c4_30, %c0_31, %c0_32], %46 {strides = array<i32>} : memref<8x8x128xbf16, #tpu.memory_space<vmem>>, vector<1x8x128xbf16>,
    %c5 = arith.constant 5 : index
    %c0_33 = arith.constant 0 : index
    %c0_34 = arith.constant 0 : index
    %47 = vector.load %arg1[%c5, %c0_33, %c0_34] : memref<8x8x32xbf16, #tpu.memory_space<vmem>>, vector<1x8x32xbf16>
    %48 = vector.shape_cast %47 : vector<1x8x32xbf16> to vector<8x32xbf16>
    %cst_35 = arith.constant dense<0.000000e+00> : vector<8x128xf32>
    %49 = tpu.matmul %48, %0, %cst_35 {dimension_numbers = #tpu.dot_dimension_numbers<[1], [0], [0], [1], [0, 0, 1, 1], [], []>} : vector<8x32xbf16>, vector<32x128xbf16>, vector<8x128xf32> -> vector<8x128xf32>
    %50 = vector.broadcast %1 : vector<1x128xf32> to vector<8x128xf32>
    %51 = arith.addf %49, %50 : vector<8x128xf32>
    %52 = arith.truncf %51 : vector<8x128xf32> to vector<8x128xbf16>
    %c5_36 = arith.constant 5 : index
    %c0_37 = arith.constant 0 : index
    %c0_38 = arith.constant 0 : index
    %53 = vector.load %arg7[%c5_36, %c0_37, %c0_38] : memref<8x8x128xbf16, #tpu.memory_space<vmem>>, vector<1x8x128xbf16>
    %54 = vector.shape_cast %53 : vector<1x8x128xbf16> to vector<8x128xbf16>
    %55 = vector.shape_cast %52 : vector<8x128xbf16> to vector<1x8x128xbf16>
    tpu.vector_store %arg7[%c5_36, %c0_37, %c0_38], %55 {strides = array<i32>} : memref<8x8x128xbf16, #tpu.memory_space<vmem>>, vector<1x8x128xbf16>,
    %c6 = arith.constant 6 : index
    %c0_39 = arith.constant 0 : index
    %c0_40 = arith.constant 0 : index
    %56 = vector.load %arg1[%c6, %c0_39, %c0_40] : memref<8x8x32xbf16, #tpu.memory_space<vmem>>, vector<1x8x32xbf16>
    %57 = vector.shape_cast %56 : vector<1x8x32xbf16> to vector<8x32xbf16>
    %cst_41 = arith.constant dense<0.000000e+00> : vector<8x128xf32>
    %58 = tpu.matmul %57, %0, %cst_41 {dimension_numbers = #tpu.dot_dimension_numbers<[1], [0], [0], [1], [0, 0, 1, 1], [], []>} : vector<8x32xbf16>, vector<32x128xbf16>, vector<8x128xf32> -> vector<8x128xf32>
    %59 = vector.broadcast %1 : vector<1x128xf32> to vector<8x128xf32>
    %60 = arith.addf %58, %59 : vector<8x128xf32>
    %61 = arith.truncf %60 : vector<8x128xf32> to vector<8x128xbf16>
    %c6_42 = arith.constant 6 : index
    %c0_43 = arith.constant 0 : index
    %c0_44 = arith.constant 0 : index
    %62 = vector.load %arg7[%c6_42, %c0_43, %c0_44] : memref<8x8x128xbf16, #tpu.memory_space<vmem>>, vector<1x8x128xbf16>
    %63 = vector.shape_cast %62 : vector<1x8x128xbf16> to vector<8x128xbf16>
    %64 = vector.shape_cast %61 : vector<8x128xbf16> to vector<1x8x128xbf16>
    tpu.vector_store %arg7[%c6_42, %c0_43, %c0_44], %64 {strides = array<i32>} : memref<8x8x128xbf16, #tpu.memory_space<vmem>>, vector<1x8x128xbf16>,
    %c7 = arith.constant 7 : index
    %c0_45 = arith.constant 0 : index
    %c0_46 = arith.constant 0 : index
    %65 = vector.load %arg1[%c7, %c0_45, %c0_46] : memref<8x8x32xbf16, #tpu.memory_space<vmem>>, vector<1x8x32xbf16>
    %66 = vector.shape_cast %65 : vector<1x8x32xbf16> to vector<8x32xbf16>
    %cst_47 = arith.constant dense<0.000000e+00> : vector<8x128xf32>
    %67 = tpu.matmul %66, %0, %cst_47 {dimension_numbers = #tpu.dot_dimension_numbers<[1], [0], [0], [1], [0, 0, 1, 1], [], []>} : vector<8x32xbf16>, vector<32x128xbf16>, vector<8x128xf32> -> vector<8x128xf32>
    %68 = vector.broadcast %1 : vector<1x128xf32> to vector<8x128xf32>
    %69 = arith.addf %67, %68 : vector<8x128xf32>
    %70 = arith.truncf %69 : vector<8x128xf32> to vector<8x128xbf16>
    %c7_48 = arith.constant 7 : index
    %c0_49 = arith.constant 0 : index
    %c0_50 = arith.constant 0 : index
    %71 = vector.load %arg7[%c7_48, %c0_49, %c0_50] : memref<8x8x128xbf16, #tpu.memory_space<vmem>>, vector<1x8x128xbf16>
    %72 = vector.shape_cast %71 : vector<1x8x128xbf16> to vector<8x128xbf16>
    %73 = vector.shape_cast %70 : vector<8x128xbf16> to vector<1x8x128xbf16>
    tpu.vector_store %arg7[%c7_48, %c0_49, %c0_50], %73 {strides = array<i32>} : memref<8x8x128xbf16, #tpu.memory_space<vmem>>, vector<1x8x128xbf16>,
    %c0_51 = arith.constant 0 : index
    %c0_52 = arith.constant 0 : index
    %74 = vector.load %arg2[%c0_51, %c0_52] : memref<8x1xi32, #tpu.memory_space<vmem>>, vector<8x1xi32>
    %c0_53 = arith.constant 0 : index
    %c0_54 = arith.constant 0 : index
    %75 = vector.load %arg4[%c0_53, %c0_54] : memref<32x128xbf16, #tpu.memory_space<vmem>>, vector<32x128xbf16>
    %cst_55 = arith.constant 0.000000e+00 : f32
    %76 = vector.broadcast %cst_55 : f32 to vector<8x32xf32>
    %cst_56 = arith.constant 0.000000e+00 : f32
    %77 = vector.broadcast %cst_56 : f32 to vector<8x32xf32>
    %c0_57 = arith.constant 0 : index
    %c0_58 = arith.constant 0 : index
    %c0_59 = arith.constant 0 : index
    %78 = vector.load %arg7[%c0_57, %c0_58, %c0_59] : memref<8x8x128xbf16, #tpu.memory_space<vmem>>, vector<1x8x128xbf16>
    %79 = vector.shape_cast %78 : vector<1x8x128xbf16> to vector<8x128xbf16>
    %80 = arith.truncf %76 : vector<8x32xf32> to vector<8x32xbf16>
    %cst_60 = arith.constant dense<0.000000e+00> : vector<8x128xf32>
    %81 = tpu.matmul %80, %75, %cst_60 {dimension_numbers = #tpu.dot_dimension_numbers<[1], [0], [0], [1], [0, 0, 1, 1], [], []>} : vector<8x32xbf16>, vector<32x128xbf16>, vector<8x128xf32> -> vector<8x128xf32>
    %82 = arith.extf %79 : vector<8x128xbf16> to vector<8x128xf32>
    %83 = arith.addf %82, %81 : vector<8x128xf32>
    %84 = vector.extract_strided_slice %83 {offsets = [0, 0], sizes = [8, 96], strides = [1, 1]} : vector<8x128xf32> to vector<8x96xf32>
    %85 = arith.negf %84 : vector<8x96xf32>
    %86 = math.exp %85 : vector<8x96xf32>
    %cst_61 = arith.constant 1.000000e+00 : f32
    %87 = vector.broadcast %cst_61 : f32 to vector<8x96xf32>
    %88 = arith.addf %87, %86 : vector<8x96xf32>
    %89 = arith.divf %87, %88 : vector<8x96xf32>
    %90 = vector.extract_strided_slice %83 {offsets = [0, 96], sizes = [8, 32], strides = [1, 1]} : vector<8x128xf32> to vector<8x32xf32>
    %91 = math.tanh %90 : vector<8x32xf32>
    %92 = vector.extract_strided_slice %89 {offsets = [0, 32], sizes = [8, 32], strides = [1, 1]} : vector<8x96xf32> to vector<8x32xf32>
    %93 = arith.mulf %92, %77 : vector<8x32xf32>
    %94 = vector.extract_strided_slice %89 {offsets = [0, 0], sizes = [8, 32], strides = [1, 1]} : vector<8x96xf32> to vector<8x32xf32>
    %95 = arith.mulf %94, %91 : vector<8x32xf32>
    %96 = arith.addf %93, %95 : vector<8x32xf32>
    %97 = vector.extract_strided_slice %89 {offsets = [0, 64], sizes = [8, 32], strides = [1, 1]} : vector<8x96xf32> to vector<8x32xf32>
    %98 = math.tanh %96 : vector<8x32xf32>
    %99 = arith.mulf %97, %98 : vector<8x32xf32>
    %c0_i32 = arith.constant 0 : i32
    %100 = vector.broadcast %c0_i32 : i32 to vector<1x16xi32>
    %c7_i32 = arith.constant 7 : i32
    %101 = vector.broadcast %c7_i32 : i32 to vector<1x16xi32>
    %102 = tpu.concatenate %100, %101 in 1 : vector<1x16xi32>, vector<1x16xi32> -> vector<1x32xi32>
    %103 = vector.broadcast %102 : vector<1x32xi32> to vector<8x32xi32>
    %104 = vector.broadcast %74 : vector<8x1xi32> to vector<8x32xi32>
    %105 = arith.cmpi slt, %103, %104 : vector<8x32xi32>
    %106 = arith.select %105, %99, %76 : vector<8x32xi1>, vector<8x32xf32>
    %107 = arith.select %105, %96, %77 : vector<8x32xi1>, vector<8x32xf32>
    %c1_62 = arith.constant 1 : index
    %c0_63 = arith.constant 0 : index
    %c0_64 = arith.constant 0 : index
    %108 = vector.load %arg7[%c1_62, %c0_63, %c0_64] : memref<8x8x128xbf16, #tpu.memory_space<vmem>>, vector<1x8x128xbf16>
    %109 = vector.shape_cast %108 : vector<1x8x128xbf16> to vector<8x128xbf16>
    %110 = arith.truncf %106 : vector<8x32xf32> to vector<8x32xbf16>
    %cst_65 = arith.constant dense<0.000000e+00> : vector<8x128xf32>
    %111 = tpu.matmul %110, %75, %cst_65 {dimension_numbers = #tpu.dot_dimension_numbers<[1], [0], [0], [1], [0, 0, 1, 1], [], []>} : vector<8x32xbf16>, vector<32x128xbf16>, vector<8x128xf32> -> vector<8x128xf32>
    %112 = arith.extf %109 : vector<8x128xbf16> to vector<8x128xf32>
    %113 = arith.addf %112, %111 : vector<8x128xf32>
    %114 = vector.extract_strided_slice %113 {offsets = [0, 0], sizes = [8, 96], strides = [1, 1]} : vector<8x128xf32> to vector<8x96xf32>
    %115 = arith.negf %114 : vector<8x96xf32>
    %116 = math.exp %115 : vector<8x96xf32>
    %cst_66 = arith.constant 1.000000e+00 : f32
    %117 = vector.broadcast %cst_66 : f32 to vector<8x96xf32>
    %118 = arith.addf %117, %116 : vector<8x96xf32>
    %119 = arith.divf %117, %118 : vector<8x96xf32>
    %120 = vector.extract_strided_slice %113 {offsets = [0, 96], sizes = [8, 32], strides = [1, 1]} : vector<8x128xf32> to vector<8x32xf32>
    %121 = math.tanh %120 : vector<8x32xf32>
    %122 = vector.extract_strided_slice %119 {offsets = [0, 32], sizes = [8, 32], strides = [1, 1]} : vector<8x96xf32> to vector<8x32xf32>
    %123 = arith.mulf %122, %107 : vector<8x32xf32>
    %124 = vector.extract_strided_slice %119 {offsets = [0, 0], sizes = [8, 32], strides = [1, 1]} : vector<8x96xf32> to vector<8x32xf32>
    %125 = arith.mulf %124, %121 : vector<8x32xf32>
    %126 = arith.addf %123, %125 : vector<8x32xf32>
    %127 = vector.extract_strided_slice %119 {offsets = [0, 64], sizes = [8, 32], strides = [1, 1]} : vector<8x96xf32> to vector<8x32xf32>
    %128 = math.tanh %126 : vector<8x32xf32>
    %129 = arith.mulf %127, %128 : vector<8x32xf32>
    %c1_i32 = arith.constant 1 : i32
    %130 = vector.broadcast %c1_i32 : i32 to vector<1x16xi32>
    %c6_i32 = arith.constant 6 : i32
    %131 = vector.broadcast %c6_i32 : i32 to vector<1x16xi32>
    %132 = tpu.concatenate %130, %131 in 1 : vector<1x16xi32>, vector<1x16xi32> -> vector<1x32xi32>
    %133 = vector.broadcast %132 : vector<1x32xi32> to vector<8x32xi32>
    %134 = vector.broadcast %74 : vector<8x1xi32> to vector<8x32xi32>
    %135 = arith.cmpi slt, %133, %134 : vector<8x32xi32>
    %136 = arith.select %135, %129, %106 : vector<8x32xi1>, vector<8x32xf32>
    %137 = arith.select %135, %126, %107 : vector<8x32xi1>, vector<8x32xf32>
    %c2_67 = arith.constant 2 : index
    %c0_68 = arith.constant 0 : index
    %c0_69 = arith.constant 0 : index
    %138 = vector.load %arg7[%c2_67, %c0_68, %c0_69] : memref<8x8x128xbf16, #tpu.memory_space<vmem>>, vector<1x8x128xbf16>
    %139 = vector.shape_cast %138 : vector<1x8x128xbf16> to vector<8x128xbf16>
    %140 = arith.truncf %136 : vector<8x32xf32> to vector<8x32xbf16>
    %cst_70 = arith.constant dense<0.000000e+00> : vector<8x128xf32>
    %141 = tpu.matmul %140, %75, %cst_70 {dimension_numbers = #tpu.dot_dimension_numbers<[1], [0], [0], [1], [0, 0, 1, 1], [], []>} : vector<8x32xbf16>, vector<32x128xbf16>, vector<8x128xf32> -> vector<8x128xf32>
    %142 = arith.extf %139 : vector<8x128xbf16> to vector<8x128xf32>
    %143 = arith.addf %142, %141 : vector<8x128xf32>
    %144 = vector.extract_strided_slice %143 {offsets = [0, 0], sizes = [8, 96], strides = [1, 1]} : vector<8x128xf32> to vector<8x96xf32>
    %145 = arith.negf %144 : vector<8x96xf32>
    %146 = math.exp %145 : vector<8x96xf32>
    %cst_71 = arith.constant 1.000000e+00 : f32
    %147 = vector.broadcast %cst_71 : f32 to vector<8x96xf32>
    %148 = arith.addf %147, %146 : vector<8x96xf32>
    %149 = arith.divf %147, %148 : vector<8x96xf32>
    %150 = vector.extract_strided_slice %143 {offsets = [0, 96], sizes = [8, 32], strides = [1, 1]} : vector<8x128xf32> to vector<8x32xf32>
    %151 = math.tanh %150 : vector<8x32xf32>
    %152 = vector.extract_strided_slice %149 {offsets = [0, 32], sizes = [8, 32], strides = [1, 1]} : vector<8x96xf32> to vector<8x32xf32>
    %153 = arith.mulf %152, %137 : vector<8x32xf32>
    %154 = vector.extract_strided_slice %149 {offsets = [0, 0], sizes = [8, 32], strides = [1, 1]} : vector<8x96xf32> to vector<8x32xf32>
    %155 = arith.mulf %154, %151 : vector<8x32xf32>
    %156 = arith.addf %153, %155 : vector<8x32xf32>
    %157 = vector.extract_strided_slice %149 {offsets = [0, 64], sizes = [8, 32], strides = [1, 1]} : vector<8x96xf32> to vector<8x32xf32>
    %158 = math.tanh %156 : vector<8x32xf32>
    %159 = arith.mulf %157, %158 : vector<8x32xf32>
    %c2_i32 = arith.constant 2 : i32
    %160 = vector.broadcast %c2_i32 : i32 to vector<1x16xi32>
    %c5_i32 = arith.constant 5 : i32
    %161 = vector.broadcast %c5_i32 : i32 to vector<1x16xi32>
    %162 = tpu.concatenate %160, %161 in 1 : vector<1x16xi32>, vector<1x16xi32> -> vector<1x32xi32>
    %163 = vector.broadcast %162 : vector<1x32xi32> to vector<8x32xi32>
    %164 = vector.broadcast %74 : vector<8x1xi32> to vector<8x32xi32>
    %165 = arith.cmpi slt, %163, %164 : vector<8x32xi32>
    %166 = arith.select %165, %159, %136 : vector<8x32xi1>, vector<8x32xf32>
    %167 = arith.select %165, %156, %137 : vector<8x32xi1>, vector<8x32xf32>
    %c3_72 = arith.constant 3 : index
    %c0_73 = arith.constant 0 : index
    %c0_74 = arith.constant 0 : index
    %168 = vector.load %arg7[%c3_72, %c0_73, %c0_74] : memref<8x8x128xbf16, #tpu.memory_space<vmem>>, vector<1x8x128xbf16>
    %169 = vector.shape_cast %168 : vector<1x8x128xbf16> to vector<8x128xbf16>
    %170 = arith.truncf %166 : vector<8x32xf32> to vector<8x32xbf16>
    %cst_75 = arith.constant dense<0.000000e+00> : vector<8x128xf32>
    %171 = tpu.matmul %170, %75, %cst_75 {dimension_numbers = #tpu.dot_dimension_numbers<[1], [0], [0], [1], [0, 0, 1, 1], [], []>} : vector<8x32xbf16>, vector<32x128xbf16>, vector<8x128xf32> -> vector<8x128xf32>
    %172 = arith.extf %169 : vector<8x128xbf16> to vector<8x128xf32>
    %173 = arith.addf %172, %171 : vector<8x128xf32>
    %174 = vector.extract_strided_slice %173 {offsets = [0, 0], sizes = [8, 96], strides = [1, 1]} : vector<8x128xf32> to vector<8x96xf32>
    %175 = arith.negf %174 : vector<8x96xf32>
    %176 = math.exp %175 : vector<8x96xf32>
    %cst_76 = arith.constant 1.000000e+00 : f32
    %177 = vector.broadcast %cst_76 : f32 to vector<8x96xf32>
    %178 = arith.addf %177, %176 : vector<8x96xf32>
    %179 = arith.divf %177, %178 : vector<8x96xf32>
    %180 = vector.extract_strided_slice %173 {offsets = [0, 96], sizes = [8, 32], strides = [1, 1]} : vector<8x128xf32> to vector<8x32xf32>
    %181 = math.tanh %180 : vector<8x32xf32>
    %182 = vector.extract_strided_slice %179 {offsets = [0, 32], sizes = [8, 32], strides = [1, 1]} : vector<8x96xf32> to vector<8x32xf32>
    %183 = arith.mulf %182, %167 : vector<8x32xf32>
    %184 = vector.extract_strided_slice %179 {offsets = [0, 0], sizes = [8, 32], strides = [1, 1]} : vector<8x96xf32> to vector<8x32xf32>
    %185 = arith.mulf %184, %181 : vector<8x32xf32>
    %186 = arith.addf %183, %185 : vector<8x32xf32>
    %187 = vector.extract_strided_slice %179 {offsets = [0, 64], sizes = [8, 32], strides = [1, 1]} : vector<8x96xf32> to vector<8x32xf32>
    %188 = math.tanh %186 : vector<8x32xf32>
    %189 = arith.mulf %187, %188 : vector<8x32xf32>
    %c3_i32 = arith.constant 3 : i32
    %190 = vector.broadcast %c3_i32 : i32 to vector<1x16xi32>
    %c4_i32 = arith.constant 4 : i32
    %191 = vector.broadcast %c4_i32 : i32 to vector<1x16xi32>
    %192 = tpu.concatenate %190, %191 in 1 : vector<1x16xi32>, vector<1x16xi32> -> vector<1x32xi32>
    %193 = vector.broadcast %192 : vector<1x32xi32> to vector<8x32xi32>
    %194 = vector.broadcast %74 : vector<8x1xi32> to vector<8x32xi32>
    %195 = arith.cmpi slt, %193, %194 : vector<8x32xi32>
    %196 = arith.select %195, %189, %166 : vector<8x32xi1>, vector<8x32xf32>
    %197 = arith.select %195, %186, %167 : vector<8x32xi1>, vector<8x32xf32>
    %c4_77 = arith.constant 4 : index
    %c0_78 = arith.constant 0 : index
    %c0_79 = arith.constant 0 : index
    %198 = vector.load %arg7[%c4_77, %c0_78, %c0_79] : memref<8x8x128xbf16, #tpu.memory_space<vmem>>, vector<1x8x128xbf16>
    %199 = vector.shape_cast %198 : vector<1x8x128xbf16> to vector<8x128xbf16>
    %200 = arith.truncf %196 : vector<8x32xf32> to vector<8x32xbf16>
    %cst_80 = arith.constant dense<0.000000e+00> : vector<8x128xf32>
    %201 = tpu.matmul %200, %75, %cst_80 {dimension_numbers = #tpu.dot_dimension_numbers<[1], [0], [0], [1], [0, 0, 1, 1], [], []>} : vector<8x32xbf16>, vector<32x128xbf16>, vector<8x128xf32> -> vector<8x128xf32>
    %202 = arith.extf %199 : vector<8x128xbf16> to vector<8x128xf32>
    %203 = arith.addf %202, %201 : vector<8x128xf32>
    %204 = vector.extract_strided_slice %203 {offsets = [0, 0], sizes = [8, 96], strides = [1, 1]} : vector<8x128xf32> to vector<8x96xf32>
    %205 = arith.negf %204 : vector<8x96xf32>
    %206 = math.exp %205 : vector<8x96xf32>
    %cst_81 = arith.constant 1.000000e+00 : f32
    %207 = vector.broadcast %cst_81 : f32 to vector<8x96xf32>
    %208 = arith.addf %207, %206 : vector<8x96xf32>
    %209 = arith.divf %207, %208 : vector<8x96xf32>
    %210 = vector.extract_strided_slice %203 {offsets = [0, 96], sizes = [8, 32], strides = [1, 1]} : vector<8x128xf32> to vector<8x32xf32>
    %211 = math.tanh %210 : vector<8x32xf32>
    %212 = vector.extract_strided_slice %209 {offsets = [0, 32], sizes = [8, 32], strides = [1, 1]} : vector<8x96xf32> to vector<8x32xf32>
    %213 = arith.mulf %212, %197 : vector<8x32xf32>
    %214 = vector.extract_strided_slice %209 {offsets = [0, 0], sizes = [8, 32], strides = [1, 1]} : vector<8x96xf32> to vector<8x32xf32>
    %215 = arith.mulf %214, %211 : vector<8x32xf32>
    %216 = arith.addf %213, %215 : vector<8x32xf32>
    %217 = vector.extract_strided_slice %209 {offsets = [0, 64], sizes = [8, 32], strides = [1, 1]} : vector<8x96xf32> to vector<8x32xf32>
    %218 = math.tanh %216 : vector<8x32xf32>
    %219 = arith.mulf %217, %218 : vector<8x32xf32>
    %c4_i32_82 = arith.constant 4 : i32
    %220 = vector.broadcast %c4_i32_82 : i32 to vector<1x16xi32>
    %c3_i32_83 = arith.constant 3 : i32
    %221 = vector.broadcast %c3_i32_83 : i32 to vector<1x16xi32>
    %222 = tpu.concatenate %220, %221 in 1 : vector<1x16xi32>, vector<1x16xi32> -> vector<1x32xi32>
    %223 = vector.broadcast %222 : vector<1x32xi32> to vector<8x32xi32>
    %224 = vector.broadcast %74 : vector<8x1xi32> to vector<8x32xi32>
    %225 = arith.cmpi slt, %223, %224 : vector<8x32xi32>
    %226 = arith.select %225, %219, %196 : vector<8x32xi1>, vector<8x32xf32>
    %227 = arith.select %225, %216, %197 : vector<8x32xi1>, vector<8x32xf32>
    %c5_84 = arith.constant 5 : index
    %c0_85 = arith.constant 0 : index
    %c0_86 = arith.constant 0 : index
    %228 = vector.load %arg7[%c5_84, %c0_85, %c0_86] : memref<8x8x128xbf16, #tpu.memory_space<vmem>>, vector<1x8x128xbf16>
    %229 = vector.shape_cast %228 : vector<1x8x128xbf16> to vector<8x128xbf16>
    %230 = arith.truncf %226 : vector<8x32xf32> to vector<8x32xbf16>
    %cst_87 = arith.constant dense<0.000000e+00> : vector<8x128xf32>
    %231 = tpu.matmul %230, %75, %cst_87 {dimension_numbers = #tpu.dot_dimension_numbers<[1], [0], [0], [1], [0, 0, 1, 1], [], []>} : vector<8x32xbf16>, vector<32x128xbf16>, vector<8x128xf32> -> vector<8x128xf32>
    %232 = arith.extf %229 : vector<8x128xbf16> to vector<8x128xf32>
    %233 = arith.addf %232, %231 : vector<8x128xf32>
    %234 = vector.extract_strided_slice %233 {offsets = [0, 0], sizes = [8, 96], strides = [1, 1]} : vector<8x128xf32> to vector<8x96xf32>
    %235 = arith.negf %234 : vector<8x96xf32>
    %236 = math.exp %235 : vector<8x96xf32>
    %cst_88 = arith.constant 1.000000e+00 : f32
    %237 = vector.broadcast %cst_88 : f32 to vector<8x96xf32>
    %238 = arith.addf %237, %236 : vector<8x96xf32>
    %239 = arith.divf %237, %238 : vector<8x96xf32>
    %240 = vector.extract_strided_slice %233 {offsets = [0, 96], sizes = [8, 32], strides = [1, 1]} : vector<8x128xf32> to vector<8x32xf32>
    %241 = math.tanh %240 : vector<8x32xf32>
    %242 = vector.extract_strided_slice %239 {offsets = [0, 32], sizes = [8, 32], strides = [1, 1]} : vector<8x96xf32> to vector<8x32xf32>
    %243 = arith.mulf %242, %227 : vector<8x32xf32>
    %244 = vector.extract_strided_slice %239 {offsets = [0, 0], sizes = [8, 32], strides = [1, 1]} : vector<8x96xf32> to vector<8x32xf32>
    %245 = arith.mulf %244, %241 : vector<8x32xf32>
    %246 = arith.addf %243, %245 : vector<8x32xf32>
    %247 = vector.extract_strided_slice %239 {offsets = [0, 64], sizes = [8, 32], strides = [1, 1]} : vector<8x96xf32> to vector<8x32xf32>
    %248 = math.tanh %246 : vector<8x32xf32>
    %249 = arith.mulf %247, %248 : vector<8x32xf32>
    %c5_i32_89 = arith.constant 5 : i32
    %250 = vector.broadcast %c5_i32_89 : i32 to vector<1x16xi32>
    %c2_i32_90 = arith.constant 2 : i32
    %251 = vector.broadcast %c2_i32_90 : i32 to vector<1x16xi32>
    %252 = tpu.concatenate %250, %251 in 1 : vector<1x16xi32>, vector<1x16xi32> -> vector<1x32xi32>
    %253 = vector.broadcast %252 : vector<1x32xi32> to vector<8x32xi32>
    %254 = vector.broadcast %74 : vector<8x1xi32> to vector<8x32xi32>
    %255 = arith.cmpi slt, %253, %254 : vector<8x32xi32>
    %256 = arith.select %255, %249, %226 : vector<8x32xi1>, vector<8x32xf32>
    %257 = arith.select %255, %246, %227 : vector<8x32xi1>, vector<8x32xf32>
    %c6_91 = arith.constant 6 : index
    %c0_92 = arith.constant 0 : index
    %c0_93 = arith.constant 0 : index
    %258 = vector.load %arg7[%c6_91, %c0_92, %c0_93] : memref<8x8x128xbf16, #tpu.memory_space<vmem>>, vector<1x8x128xbf16>
    %259 = vector.shape_cast %258 : vector<1x8x128xbf16> to vector<8x128xbf16>
    %260 = arith.truncf %256 : vector<8x32xf32> to vector<8x32xbf16>
    %cst_94 = arith.constant dense<0.000000e+00> : vector<8x128xf32>
    %261 = tpu.matmul %260, %75, %cst_94 {dimension_numbers = #tpu.dot_dimension_numbers<[1], [0], [0], [1], [0, 0, 1, 1], [], []>} : vector<8x32xbf16>, vector<32x128xbf16>, vector<8x128xf32> -> vector<8x128xf32>
    %262 = arith.extf %259 : vector<8x128xbf16> to vector<8x128xf32>
    %263 = arith.addf %262, %261 : vector<8x128xf32>
    %264 = vector.extract_strided_slice %263 {offsets = [0, 0], sizes = [8, 96], strides = [1, 1]} : vector<8x128xf32> to vector<8x96xf32>
    %265 = arith.negf %264 : vector<8x96xf32>
    %266 = math.exp %265 : vector<8x96xf32>
    %cst_95 = arith.constant 1.000000e+00 : f32
    %267 = vector.broadcast %cst_95 : f32 to vector<8x96xf32>
    %268 = arith.addf %267, %266 : vector<8x96xf32>
    %269 = arith.divf %267, %268 : vector<8x96xf32>
    %270 = vector.extract_strided_slice %263 {offsets = [0, 96], sizes = [8, 32], strides = [1, 1]} : vector<8x128xf32> to vector<8x32xf32>
    %271 = math.tanh %270 : vector<8x32xf32>
    %272 = vector.extract_strided_slice %269 {offsets = [0, 32], sizes = [8, 32], strides = [1, 1]} : vector<8x96xf32> to vector<8x32xf32>
    %273 = arith.mulf %272, %257 : vector<8x32xf32>
    %274 = vector.extract_strided_slice %269 {offsets = [0, 0], sizes = [8, 32], strides = [1, 1]} : vector<8x96xf32> to vector<8x32xf32>
    %275 = arith.mulf %274, %271 : vector<8x32xf32>
    %276 = arith.addf %273, %275 : vector<8x32xf32>
    %277 = vector.extract_strided_slice %269 {offsets = [0, 64], sizes = [8, 32], strides = [1, 1]} : vector<8x96xf32> to vector<8x32xf32>
    %278 = math.tanh %276 : vector<8x32xf32>
    %279 = arith.mulf %277, %278 : vector<8x32xf32>
    %c6_i32_96 = arith.constant 6 : i32
    %280 = vector.broadcast %c6_i32_96 : i32 to vector<1x16xi32>
    %c1_i32_97 = arith.constant 1 : i32
    %281 = vector.broadcast %c1_i32_97 : i32 to vector<1x16xi32>
    %282 = tpu.concatenate %280, %281 in 1 : vector<1x16xi32>, vector<1x16xi32> -> vector<1x32xi32>
    %283 = vector.broadcast %282 : vector<1x32xi32> to vector<8x32xi32>
    %284 = vector.broadcast %74 : vector<8x1xi32> to vector<8x32xi32>
    %285 = arith.cmpi slt, %283, %284 : vector<8x32xi32>
    %286 = arith.select %285, %279, %256 : vector<8x32xi1>, vector<8x32xf32>
    %287 = arith.select %285, %276, %257 : vector<8x32xi1>, vector<8x32xf32>
    %c7_98 = arith.constant 7 : index
    %c0_99 = arith.constant 0 : index
    %c0_100 = arith.constant 0 : index
    %288 = vector.load %arg7[%c7_98, %c0_99, %c0_100] : memref<8x8x128xbf16, #tpu.memory_space<vmem>>, vector<1x8x128xbf16>
    %289 = vector.shape_cast %288 : vector<1x8x128xbf16> to vector<8x128xbf16>
    %290 = arith.truncf %286 : vector<8x32xf32> to vector<8x32xbf16>
    %cst_101 = arith.constant dense<0.000000e+00> : vector<8x128xf32>
    %291 = tpu.matmul %290, %75, %cst_101 {dimension_numbers = #tpu.dot_dimension_numbers<[1], [0], [0], [1], [0, 0, 1, 1], [], []>} : vector<8x32xbf16>, vector<32x128xbf16>, vector<8x128xf32> -> vector<8x128xf32>
    %292 = arith.extf %289 : vector<8x128xbf16> to vector<8x128xf32>
    %293 = arith.addf %292, %291 : vector<8x128xf32>
    %294 = vector.extract_strided_slice %293 {offsets = [0, 0], sizes = [8, 96], strides = [1, 1]} : vector<8x128xf32> to vector<8x96xf32>
    %295 = arith.negf %294 : vector<8x96xf32>
    %296 = math.exp %295 : vector<8x96xf32>
    %cst_102 = arith.constant 1.000000e+00 : f32
    %297 = vector.broadcast %cst_102 : f32 to vector<8x96xf32>
    %298 = arith.addf %297, %296 : vector<8x96xf32>
    %299 = arith.divf %297, %298 : vector<8x96xf32>
    %300 = vector.extract_strided_slice %293 {offsets = [0, 96], sizes = [8, 32], strides = [1, 1]} : vector<8x128xf32> to vector<8x32xf32>
    %301 = math.tanh %300 : vector<8x32xf32>
    %302 = vector.extract_strided_slice %299 {offsets = [0, 32], sizes = [8, 32], strides = [1, 1]} : vector<8x96xf32> to vector<8x32xf32>
    %303 = arith.mulf %302, %287 : vector<8x32xf32>
    %304 = vector.extract_strided_slice %299 {offsets = [0, 0], sizes = [8, 32], strides = [1, 1]} : vector<8x96xf32> to vector<8x32xf32>
    %305 = arith.mulf %304, %301 : vector<8x32xf32>
    %306 = arith.addf %303, %305 : vector<8x32xf32>
    %307 = vector.extract_strided_slice %299 {offsets = [0, 64], sizes = [8, 32], strides = [1, 1]} : vector<8x96xf32> to vector<8x32xf32>
    %308 = math.tanh %306 : vector<8x32xf32>
    %309 = arith.mulf %307, %308 : vector<8x32xf32>
    %c7_i32_103 = arith.constant 7 : i32
    %310 = vector.broadcast %c7_i32_103 : i32 to vector<1x16xi32>
    %c0_i32_104 = arith.constant 0 : i32
    %311 = vector.broadcast %c0_i32_104 : i32 to vector<1x16xi32>
    %312 = tpu.concatenate %310, %311 in 1 : vector<1x16xi32>, vector<1x16xi32> -> vector<1x32xi32>
    %313 = vector.broadcast %312 : vector<1x32xi32> to vector<8x32xi32>
    %314 = vector.broadcast %74 : vector<8x1xi32> to vector<8x32xi32>
    %315 = arith.cmpi slt, %313, %314 : vector<8x32xi32>
    %316 = arith.select %315, %309, %286 : vector<8x32xi1>, vector<8x32xf32>
    %c0_105 = arith.constant 0 : index
    %c0_106 = arith.constant 0 : index
    %317 = vector.load %arg6[%c0_105, %c0_106] : memref<8x32xf32, #tpu.memory_space<vmem>>, vector<8x32xf32>
    tpu.vector_store %arg6[%c0_105, %c0_106], %316 {strides = array<i32>} : memref<8x32xf32, #tpu.memory_space<vmem>>, vector<8x32xf32>,
    return
  }
  func.func @transform_0(%arg0: i32) -> (i32, i32, i32) {
    %c0_i32 = arith.constant 0 : i32
    %c0_i32_0 = arith.constant 0 : i32
    %c0_i32_1 = arith.constant 0 : i32
    return %c0_i32, %arg0, %c0_i32_0 : i32, i32, i32
  }
  func.func @transform_1(%arg0: i32) -> (i32, i32) {
    %c0_i32 = arith.constant 0 : i32
    %c0_i32_0 = arith.constant 0 : i32
    return %arg0, %c0_i32 : i32, i32
  }
  func.func @transform_2(%arg0: i32) -> (i32, i32) {
    %c0_i32 = arith.constant 0 : i32
    %c0_i32_0 = arith.constant 0 : i32
    %c0_i32_1 = arith.constant 0 : i32
    return %c0_i32, %c0_i32_0 : i32, i32
  }
  func.func @transform_3(%arg0: i32) -> (i32, i32) {
    %c0_i32 = arith.constant 0 : i32
    %c0_i32_0 = arith.constant 0 : i32
    %c0_i32_1 = arith.constant 0 : i32
    return %c0_i32, %c0_i32_0 : i32, i32
  }
  func.func @transform_4(%arg0: i32) -> (i32, i32) {
    %c0_i32 = arith.constant 0 : i32
    %c0_i32_0 = arith.constant 0 : i32
    %c0_i32_1 = arith.constant 0 : i32
    return %c0_i32, %c0_i32_0 : i32, i32
  }
  func.func @transform_5(%arg0: i32) -> (i32, i32) {
    %c0_i32 = arith.constant 0 : i32
    %c0_i32_0 = arith.constant 0 : i32
    return %arg0, %c0_i32 : i32, i32
  }
}

</mosaic_0001>

<llo_original>
// kernel: char_lstm_encoding.1
$region0: #{char_lstm_encoding.1}
  #allocation0 [shape = 'u32[]', space=smem, size = 0x4, offset = 0x4, fixed_abs, tag = 'smem constant byte address 0x4 - core index']
  #allocation1 [shape = 'u32[144,128]{1,0:T(1,128)}', space=vmem, size = 0x12000, scoped, tag = 'internal scratch']
  #allocation2 [shape = 'bf16[8,8,128]{2,1,0:T(8,128)(2,1)}', space=vmem, size = 0x4000, scoped, tag = 'scratch operand']
  %s0 = inlined_call_operand.vmem [shape: bf16[8,16,32], index: 0, kind: input, shape index: {}]
  %s1 = inlined_call_operand.vmem [shape: s32[16,1], index: 1, kind: input, shape index: {}]
  %s2 = inlined_call_operand.vmem [shape: bf16[32,128], index: 2, kind: input, shape index: {}]
  %s3 = inlined_call_operand.vmem [shape: bf16[32,128], index: 3, kind: input, shape index: {}]
  %s4 = inlined_call_operand.vmem [shape: f32[1,128], index: 4, kind: input, shape index: {}]
  %s5 = inlined_call_operand.hbm [shape: f32[16,32], index: 5, kind: output, shape index: {}]
  %s6 = sld [smem:[#allocation0]]
  $region94: #{char_lstm_encoding.1} parent=0
    _
  %s8 = ssub.s32 1, %s6
  %s9 = scalar_select 0, %s8, %s6
  $region1: #{char_lstm_encoding.1} parent=0
    #allocation3 [shape = 'u8[32768]{0}', space=vmem, size = 0x8000, scoped, tag = 'input window, operand 0']
    #allocation4 [shape = 'u8[8192]{0}', space=vmem, size = 0x2000, scoped, tag = 'output window, operand 0']
    #allocation5 [shape = 's32[2]{0}', space=sflag, size = 0x8, scoped, tag = 'scoped memory for char_lstm_encoding.1']
    %10 = vsyncpa [#allocation5], 0
    %s11 = scalar_lea.sflag [#allocation5], 1
    %12 = vsyncpa %s11, 0
    loop: start=0, step=1, limit=4
    $region2: #{char_lstm_encoding.1} parent=1 // loop_pre_header
      _
    $region3: #{char_lstm_encoding.1} parent=1 // loop_header
      %s14 = sphi 0, %s18
      %p15 = scmp.ge.s32.totalorder %s14, 4
      %s24 = sphi 0, %s26
      %s27 = sphi 0, %s24
      %s28 = sphi 0, %s27
      %s44 = sphi 0, %s28
      %s50 = sphi 0, %s52
      %s53 = sphi 0, %s50
      %s54 = sphi 0, %s53
      %s70 = sphi 0, %s54
      %s74 = sphi 0, %s74
      %s76 = sphi 0, %s74
      %s77 = sphi 0, %s76
      %s91 = sphi 0, %s77
      %s95 = sphi 0, %s95
      %s97 = sphi 0, %s95
      %s98 = sphi 0, %s97
      %s112 = sphi 0, %s98
      %s116 = sphi 0, %s116
      %s118 = sphi 0, %s116
      %s119 = sphi 0, %s118
      %s133 = sphi 0, %s119
      %s139 = sphi 0, %s141
      %s142 = sphi 0, %s139
      %s143 = sphi 0, %s142
      %s159 = sphi 0, %s143
    $region4: #{char_lstm_encoding.1} parent=1 // loop_header_branch
      %17 = sbr.rel (%p15) target = $region8
    $region5: #{char_lstm_encoding.1} parent=1 // loop_body
      %s19 = ssub.s32 %s14, 1
      %s20 = ssub.s32 %s14, 2
      %s21 = sadd.s32 %s14, 1
      %s22 = ssub.s32 %s14, %s21
      %p23 = scmp.eq.s32.totalorder %s22, 0
      %s25 = sadd.s32 %s24, 1
      %s26 = scalar_select %p23, %s24, %s25
      %p29 = pneg %p23
      %p30 = scmp.eq.s32.totalorder %s14, 1
      %p31 = por %p29, %p30
      %p32 = scmp.ne.s32.totalorder %s24, %s27
      %p33 = scmp.eq.s32.totalorder %s14, 0
      %p34 = por %p32, %p33
      %p35 = scmp.ne.s32.totalorder %s24, %s27
      %p36 = scmp.eq.s32.totalorder %s19, 1
      %p37 = por %p35, %p36
      %p38 = scmp.ne.s32.totalorder %s27, %s28
      %p39 = scmp.eq.s32.totalorder %s19, 0
      %p40 = por %p38, %p39
      %p41 = scmp.ne.s32.totalorder %s27, %s28
      %p42 = scmp.eq.s32.totalorder %s20, 1
      %p43 = por %p41, %p42
      %p45 = scmp.ne.s32.totalorder %s28, %s44
      %p46 = scmp.eq.s32.totalorder %s20, 0
      %p47 = por %p45, %p46
      %s48 = ssub.s32 %s14, %s21
      %p49 = scmp.eq.s32.totalorder %s48, 0
      %s51 = sadd.s32 %s50, 1
      %s52 = scalar_select %p49, %s50, %s51
      %p55 = pneg %p49
      %p56 = scmp.eq.s32.totalorder %s14, 1
      %p57 = por %p55, %p56
      %p58 = scmp.ne.s32.totalorder %s50, %s53
      %p59 = scmp.eq.s32.totalorder %s14, 0
      %p60 = por %p58, %p59
      %p61 = scmp.ne.s32.totalorder %s50, %s53
      %p62 = scmp.eq.s32.totalorder %s19, 1
      %p63 = por %p61, %p62
      %p64 = scmp.ne.s32.totalorder %s53, %s54
      %p65 = scmp.eq.s32.totalorder %s19, 0
      %p66 = por %p64, %p65
      %p67 = scmp.ne.s32.totalorder %s53, %s54
      %p68 = scmp.eq.s32.totalorder %s20, 1
      %p69 = por %p67, %p68
      %p71 = scmp.ne.s32.totalorder %s54, %s70
      %p72 = scmp.eq.s32.totalorder %s20, 0
      %p73 = por %p71, %p72
      %s75 = sadd.s32 %s74, 1
      %p78 = scmp.eq.s32.totalorder %s14, 1
      %p79 = scmp.ne.s32.totalorder %s74, %s76
      %p80 = scmp.eq.s32.totalorder %s14, 0
      %p81 = por %p79, %p80
      %p82 = scmp.ne.s32.totalorder %s74, %s76
      %p83 = scmp.eq.s32.totalorder %s19, 1
      %p84 = por %p82, %p83
      %p85 = scmp.ne.s32.totalorder %s76, %s77
      %p86 = scmp.eq.s32.totalorder %s19, 0
      %p87 = por %p85, %p86
      %p88 = scmp.ne.s32.totalorder %s76, %s77
      %p89 = scmp.eq.s32.totalorder %s20, 1
      %p90 = por %p88, %p89
      %p92 = scmp.ne.s32.totalorder %s77, %s91
      %p93 = scmp.eq.s32.totalorder %s20, 0
      %p94 = por %p92, %p93
      %s96 = sadd.s32 %s95, 1
      %p99 = scmp.eq.s32.totalorder %s14, 1
      %p100 = scmp.ne.s32.totalorder %s95, %s97
      %p101 = scmp.eq.s32.totalorder %s14, 0
      %p102 = por %p100, %p101
      %p103 = scmp.ne.s32.totalorder %s95, %s97
      %p104 = scmp.eq.s32.totalorder %s19, 1
      %p105 = por %p103, %p104
      %p106 = scmp.ne.s32.totalorder %s97, %s98
      %p107 = scmp.eq.s32.totalorder %s19, 0
      %p108 = por %p106, %p107
      %p109 = scmp.ne.s32.totalorder %s97, %s98
      %p110 = scmp.eq.s32.totalorder %s20, 1
      %p111 = por %p109, %p110
      %p113 = scmp.ne.s32.totalorder %s98, %s112
      %p114 = scmp.eq.s32.totalorder %s20, 0
      %p115 = por %p113, %p114
      %s117 = sadd.s32 %s116, 1
      %p120 = scmp.eq.s32.totalorder %s14, 1
      %p121 = scmp.ne.s32.totalorder %s116, %s118
      %p122 = scmp.eq.s32.totalorder %s14, 0
      %p123 = por %p121, %p122
      %p124 = scmp.ne.s32.totalorder %s116, %s118
      %p125 = scmp.eq.s32.totalorder %s19, 1
      %p126 = por %p124, %p125
      %p127 = scmp.ne.s32.totalorder %s118, %s119
      %p128 = scmp.eq.s32.totalorder %s19, 0
      %p129 = por %p127, %p128
      %p130 = scmp.ne.s32.totalorder %s118, %s119
      %p131 = scmp.eq.s32.totalorder %s20, 1
      %p132 = por %p130, %p131
      %p134 = scmp.ne.s32.totalorder %s119, %s133
      %p135 = scmp.eq.s32.totalorder %s20, 0
      %p136 = por %p134, %p135
      %s137 = ssub.s32 %s14, %s21
      %p138 = scmp.eq.s32.totalorder %s137, 0
      %s140 = sadd.s32 %s139, 1
      %s141 = scalar_select %p138, %s139, %s140
      %p144 = pneg %p138
      %p145 = scmp.eq.s32.totalorder %s14, 1
      %p146 = por %p144, %p145
      %p147 = scmp.ne.s32.totalorder %s139, %s142
      %p148 = scmp.eq.s32.totalorder %s14, 0
      %p149 = por %p147, %p148
      %p150 = scmp.ne.s32.totalorder %s139, %s142
      %p151 = scmp.eq.s32.totalorder %s19, 1
      %p152 = por %p150, %p151
      %p153 = scmp.ne.s32.totalorder %s142, %s143
      %p154 = scmp.eq.s32.totalorder %s19, 0
      %p155 = por %p153, %p154
      %p156 = scmp.ne.s32.totalorder %s142, %s143
      %p157 = scmp.eq.s32.totalorder %s20, 1
      %p158 = por %p156, %p157
      %p160 = scmp.ne.s32.totalorder %s143, %s159
      %p161 = scmp.eq.s32.totalorder %s20, 0
      %p162 = por %p160, %p161
      %p163 = scmp.le.s32.totalorder 1, %s14
      %p164 = scmp.lt.s32.totalorder %s14, 3
      %p165 = pnand %p163, %p164
      %p166 = pneg %p165
      // Predicated region
      $region9: #{char_lstm_encoding.1} parent=5 // pred_check
        _
      $region10: #{char_lstm_encoding.1} parent=5 // pred_check_branch
        %168 = sbr.rel (%p165) target = $region12
      $region11: #{char_lstm_encoding.1} parent=5 // pred_region
        %s169 = ssub.s32 %s14, 1
        // Predicated region
        $region13: #{char_lstm_encoding.1} parent=11 // pred_check
          %p170 = pneg %p87
        $region14: #{char_lstm_encoding.1} parent=11 // pred_check_branch
          %172 = sbr.rel (%p170) target = $region16
        $region15: #{char_lstm_encoding.1} parent=11 // pred_region
          _
        $region16: #{char_lstm_encoding.1} parent=11 // pred_fallthru
          _
        // Predicated region
        $region17: #{char_lstm_encoding.1} parent=11 // pred_check
          %p173 = pneg %p108
        $region18: #{char_lstm_encoding.1} parent=11 // pred_check_branch
          %175 = sbr.rel (%p173) target = $region20
        $region19: #{char_lstm_encoding.1} parent=11 // pred_region
          _
        $region20: #{char_lstm_encoding.1} parent=11 // pred_fallthru
          _
        // Predicated region
        $region21: #{char_lstm_encoding.1} parent=11 // pred_check
          %p176 = pneg %p129
        $region22: #{char_lstm_encoding.1} parent=11 // pred_check_branch
          %178 = sbr.rel (%p176) target = $region24
        $region23: #{char_lstm_encoding.1} parent=11 // pred_region
          _
        $region24: #{char_lstm_encoding.1} parent=11 // pred_fallthru
          _
      $region12: #{char_lstm_encoding.1} parent=5 // pred_fallthru
        _
      %p179 = scmp.lt.s32.totalorder %s14, 2
      // Predicated region
      $region25: #{char_lstm_encoding.1} parent=5 // pred_check
        %p180 = pneg %p179
      $region26: #{char_lstm_encoding.1} parent=5 // pred_check_branch
        %182 = sbr.rel (%p180) target = $region28
      $region27: #{char_lstm_encoding.1} parent=5 // pred_region
        // Predicated region
        $region29: #{char_lstm_encoding.1} parent=27 // pred_check
          %p183 = pneg %p34
        $region30: #{char_lstm_encoding.1} parent=27 // pred_check_branch
          %185 = sbr.rel (%p183) target = $region32
        $region31: #{char_lstm_encoding.1} parent=27 // pred_region
          %s186 = sand.u32 %s24, 1
          %s187 = sand.u32 %s24, 1
          %s188 = smul.addr %s187, 32
          %s189 = scalar_lea.vmem [#allocation3], %s188
          %s190 = smul.addr %s14, 4
          %s191 = scalar_lea.vmem %s0, %s190
          // Predicated region
          $region33: #{char_lstm_encoding.1} parent=31 // pred_check
            _
          $region34: #{char_lstm_encoding.1} parent=31 // pred_check_branch
            %193 = sbr.rel (0) target = $region36
          $region35: #{char_lstm_encoding.1} parent=31 // pred_region
            // Predicated region
            $region37: #{char_lstm_encoding.1} parent=35 // pred_check
              _
            $region38: #{char_lstm_encoding.1} parent=35 // pred_check_branch
              %195 = sbr.rel target = $region40
            $region39: #{char_lstm_encoding.1} parent=35 // pred_region
              // Predicated region
              $region52: #{char_lstm_encoding.1} parent=39 // pred_check
                _
              $region53: #{char_lstm_encoding.1} parent=39 // pred_check_branch
                %224 = sbr.rel (0) target = $region55
              $region54: #{char_lstm_encoding.1} parent=39 // pred_region
                loop: start=0, step=1, limit=1
                $region56: #{char_lstm_encoding.1} parent=54 // loop_pre_header
                  _
                $region57: #{char_lstm_encoding.1} parent=54 // loop_header
                  %s226 = sphi 0, %s230
                  %p227 = scmp.ge.s32.totalorder %s226, 1
                  %s231 = sphi %s191, %s191
                  %s232 = sphi %s189, %s189
                $region58: #{char_lstm_encoding.1} parent=54 // loop_header_branch
                  %229 = sbr.rel (%p227) target = $region62
                $region59: #{char_lstm_encoding.1} parent=54 // loop_body
                  _
                $region60: #{char_lstm_encoding.1} parent=54 // loop_footer
                  %s230 = sadd.s32 1, %s226
                $region61: #{char_lstm_encoding.1} parent=54 // loop_footer_branch
                  %225 = sbr.rel target = $region57
                $region62: #{char_lstm_encoding.1} parent=54 // loop_exit
                  _
                loop: start=0, step=1, limit=1
                $region63: #{char_lstm_encoding.1} parent=54 // loop_pre_header
                  _
                $region64: #{char_lstm_encoding.1} parent=54 // loop_header
                  %s235 = sphi 0, %s239
                  %p236 = scmp.ge.s32.totalorder %s235, 1
                  %s240 = sphi %s191, %s191
                  %s241 = sphi %s189, %s189
                $region65: #{char_lstm_encoding.1} parent=54 // loop_header_branch
                  %238 = sbr.rel (%p236) target = $region69
                $region66: #{char_lstm_encoding.1} parent=54 // loop_body
                  %v242 = vld [vmem:[%s240] sm:$0xf]
                  %243 = vst [vmem:[%s241] sm:$0xf] %v242
                  %v244 = vld [vmem:[%s240 + $0x8] sm:$0xf]
                  %245 = vst [vmem:[%s241 + $0x4] sm:$0xf] %v244
                  %v246 = vld [vmem:[%s240 + $0x10] sm:$0xf]
                  %247 = vst [vmem:[%s241 + $0x8] sm:$0xf] %v246
                  %v248 = vld [vmem:[%s240 + $0x18] sm:$0xf]
                  %249 = vst [vmem:[%s241 + $0xc] sm:$0xf] %v248
                  %v250 = vld [vmem:[%s240 + $0x20] sm:$0xf]
                  %251 = vst [vmem:[%s241 + $0x10] sm:$0xf] %v250
                  %v252 = vld [vmem:[%s240 + $0x28] sm:$0xf]
                  %253 = vst [vmem:[%s241 + $0x14] sm:$0xf] %v252
                  %v254 = vld [vmem:[%s240 + $0x30] sm:$0xf]
                  %255 = vst [vmem:[%s241 + $0x18] sm:$0xf] %v254
                  %v256 = vld [vmem:[%s240 + $0x38] sm:$0xf]
                  %257 = vst [vmem:[%s241 + $0x1c] sm:$0xf] %v256
                $region67: #{char_lstm_encoding.1} parent=54 // loop_footer
                  %s239 = sadd.s32 1, %s235
                $region68: #{char_lstm_encoding.1} parent=54 // loop_footer_branch
                  %234 = sbr.rel target = $region64
                $region69: #{char_lstm_encoding.1} parent=54 // loop_exit
                  _
              $region55: #{char_lstm_encoding.1} parent=39 // pred_fallthru
                _
            $region40: #{char_lstm_encoding.1} parent=35 // pred_fallthru
              _
            // Predicated region
            $region41: #{char_lstm_encoding.1} parent=35 // pred_check
              _
            $region42: #{char_lstm_encoding.1} parent=35 // pred_check_branch
              %197 = sbr.rel (0) target = $region44
            $region43: #{char_lstm_encoding.1} parent=35 // pred_region
              loop: start=0, step=1, limit=1
              $region45: #{char_lstm_encoding.1} parent=43 // loop_pre_header
                _
              $region46: #{char_lstm_encoding.1} parent=43 // loop_header
                %s200 = sphi 0, %s204
                %p201 = scmp.ge.s32.totalorder %s200, 1
                %s205 = sphi %s191, %s191
                %s206 = sphi %s189, %s189
              $region47: #{char_lstm_encoding.1} parent=43 // loop_header_branch
                %203 = sbr.rel (%p201) target = $region51
              $region48: #{char_lstm_encoding.1} parent=43 // loop_body
                %v207 = vld [vmem:[%s205] sm:$0xf]
                %208 = vst [vmem:[%s206] sm:$0xf] %v207
                %v209 = vld [vmem:[%s205 + $0x8] sm:$0xf]
                %210 = vst [vmem:[%s206 + $0x4] sm:$0xf] %v209
                %v211 = vld [vmem:[%s205 + $0x10] sm:$0xf]
                %212 = vst [vmem:[%s206 + $0x8] sm:$0xf] %v211
                %v213 = vld [vmem:[%s205 + $0x18] sm:$0xf]
                %214 = vst [vmem:[%s206 + $0xc] sm:$0xf] %v213
                %v215 = vld [vmem:[%s205 + $0x20] sm:$0xf]
                %216 = vst [vmem:[%s206 + $0x10] sm:$0xf] %v215
                %v217 = vld [vmem:[%s205 + $0x28] sm:$0xf]
                %218 = vst [vmem:[%s206 + $0x14] sm:$0xf] %v217
                %v219 = vld [vmem:[%s205 + $0x30] sm:$0xf]
                %220 = vst [vmem:[%s206 + $0x18] sm:$0xf] %v219
                %v221 = vld [vmem:[%s205 + $0x38] sm:$0xf]
                %222 = vst [vmem:[%s206 + $0x1c] sm:$0xf] %v221
              $region49: #{char_lstm_encoding.1} parent=43 // loop_footer
                %s204 = sadd.s32 1, %s200
              $region50: #{char_lstm_encoding.1} parent=43 // loop_footer_branch
                %199 = sbr.rel target = $region46
              $region51: #{char_lstm_encoding.1} parent=43 // loop_exit
                _
            $region44: #{char_lstm_encoding.1} parent=35 // pred_fallthru
              _
          $region36: #{char_lstm_encoding.1} parent=31 // pred_fallthru
            _
          %258 = vnop
        $region32: #{char_lstm_encoding.1} parent=27 // pred_fallthru
          _
        // Predicated region
        $region70: #{char_lstm_encoding.1} parent=27 // pred_check
          %p259 = pneg %p60
        $region71: #{char_lstm_encoding.1} parent=27 // pred_check_branch
          %261 = sbr.rel (%p259) target = $region73
        $region72: #{char_lstm_encoding.1} parent=27 // pred_region
          %p262 = scmp.lt.s32.totalorder %s14, 1
          %s263 = scalar_select %p262, %s14, 1
          %s264 = smul.addr %s263, 8
          %s265 = scalar_lea.vmem %s1, %s264
        $region73: #{char_lstm_encoding.1} parent=27 // pred_fallthru
          _
      $region28: #{char_lstm_encoding.1} parent=5 // pred_fallthru
        _
      %p266 = scmp.le.s32.totalorder 1, %s14
      %p267 = scmp.lt.s32.totalorder %s14, 3
      %p268 = pnand %p266, %p267
      %p269 = pneg %p268
      // Predicated region
      $region74: #{char_lstm_encoding.1} parent=5 // pred_check
        _
      $region75: #{char_lstm_encoding.1} parent=5 // pred_check_branch
        %271 = sbr.rel (%p268) target = $region77
      $region76: #{char_lstm_encoding.1} parent=5 // pred_region
        %s272 = ssub.s32 %s14, 1
        %s273 = sand.u32 %s27, 1
        %s274 = sand.u32 %s27, 1
        %s275 = smul.addr %s274, 32
        %s276 = scalar_lea.vmem [#allocation3], %s275
        // Predicated region
        $region78: #{char_lstm_encoding.1} parent=76 // pred_check
          %p277 = pneg %p40
        $region79: #{char_lstm_encoding.1} parent=76 // pred_check_branch
          %279 = sbr.rel (%p277) target = $region81
        $region80: #{char_lstm_encoding.1} parent=76 // pred_region
          _
        $region81: #{char_lstm_encoding.1} parent=76 // pred_fallthru
          _
        %s280 = sand.u32 %s27, 1
        %s281 = sand.u32 %s27, 1
        %s282 = smul.addr %s281, 32
        %s283 = scalar_lea.vmem [#allocation3], %s282
        %p284 = pneg %p40
        %p285 = pneg %p37
        %p286 = scmp.lt.s32.totalorder %s19, 1
        %s287 = scalar_select %p286, %s19, 1
        %s288 = smul.addr %s287, 8
        %s289 = scalar_lea.vmem %s1, %s288
        %p290 = pneg %p66
        %p291 = pneg %p63
        %p292 = pneg %p87
        %p293 = pneg %p84
        %p294 = pneg %p108
        %p295 = pneg %p105
        %p296 = pneg %p129
        %p297 = pneg %p126
        %p298 = pneg %p155
        %p299 = pneg %p152
        %s300 = sand.u32 %s142, 1
        %s301 = scalar_lea.sflag [#allocation5], %s300
        %s302 = sand.u32 %s142, 1
        %s303 = smul.addr %s302, 8
        %s304 = scalar_lea.vmem [#allocation4], %s303
        %p305 = scmp.lt.s32.totalorder %s19, 1
        %s306 = scalar_select %p305, %s19, 1
        %s307 = smul.addr %s306, 8
        %s308 = scalar_lea.vmem %s1, %s307
        %v310 = vld [vmem:[%s2] sm:$0xf]
        %v311 = vld [vmem:[%s2 + $0x4] sm:$0xf]
        %v312 = vld [vmem:[%s2 + $0x8] sm:$0xf]
        %v313 = vld [vmem:[%s2 + $0xc] sm:$0xf]
        %v314 = vld [vmem:[%s4] sm:$0x1]
        %v315 = vld [vmem:[%s276] sm:$0xf]
        %v317 = vlaneseq
        %v318 = vshrl.u32 %v317, 7
        %v319 = vsub.s32 0, %v318
        %v320 = vrot.slane %v314, %v319
        %v326 = vunpack.c.l.b16 %v310
        %v327 = vunpack.c.l.b16 %v311
        %v328 = vunpack.c.l.b16 %v312
        %v329 = vunpack.c.l.b16 %v313
        %v330 = vpack.c.b16 %v327, %v326
        %v331 = vpack.c.b16 %v329, %v328
        %vm334 = vcmask 261120
        %v336 = vsel %vm334, %v315, 0
        %338 = vmatprep.subr.bf16.mxu0 0
        %339 = vmatpush1.bf16.msra.mxu0 %v330
        %340 = vmatprep.subr.bf16.mxu0 0
        %341 = vmatpush1.bf16.msra.mxu0 %v331
        %342 = vmatprep.subr.bf16.mxu0 0
        %343 = vmatpush1.bf16.msra.mxu0 0
        %344 = vmatprep.subr.bf16.mxu0 0
        %345 = vmatpush1.bf16.msra.mxu0 0
        %346 = vmatprep.subr.bf16.mxu0 0
        %347 = vmatpush1.bf16.msra.mxu0 0
        %348 = vmatprep.subr.bf16.mxu0 0
        %349 = vmatpush1.bf16.msra.mxu0 0
        %350 = vmatprep.subr.bf16.mxu0 0
        %351 = vmatpush1.bf16.msra.mxu0 0
        %352 = vmatprep.subr.bf16.mxu0 0
        %353 = vmatpush1.bf16.msra.mxu0 0
        %354 = vmatprep.subr.bf16.mxu0 0
        %355 = vmatpush1.bf16.msra.mxu0 0
        %356 = vmatprep.subr.bf16.mxu0 0
        %357 = vmatpush1.bf16.msra.mxu0 0
        %358 = vmatprep.subr.bf16.mxu0 0
        %359 = vmatpush1.bf16.msra.mxu0 0
        %360 = vmatprep.subr.bf16.mxu0 0
        %361 = vmatpush1.bf16.msra.mxu0 0
        %362 = vmatprep.subr.bf16.mxu0 0
        %363 = vmatpush1.bf16.msra.mxu0 0
        %364 = vmatprep.subr.bf16.mxu0 0
        %365 = vmatpush1.bf16.msra.mxu0 0
        %366 = vmatprep.subr.bf16.mxu0 0
        %367 = vmatpush1.bf16.msra.mxu0 0
        %368 = vmatprep.subr.bf16.mxu0 0
        %369 = vmatpush1.bf16.msra.mxu0 0
        %370 = vmatprep.mubr.bf16.mxu0 0
        %371 = vmatmul.mubr.bf16.gmra.mrb[0].mxu0 %v336
        %v372 = vpop.f32.mrb[0].mxu0
        %v373 = vadd.f32 %v320, %v372
        %v374 = vpop.f32.mrb[0].mxu0
        %v375 = vpop.f32.mrb[0].mxu0
        %v376 = vpop.f32.mrb[0].mxu0
        %377 = vdwg.mxu0
        %v378 = vpack.c.bf16 %v373, %v373
        %379 = vst [vmem:[#allocation2] sm:$0xf] %v378
        %s380 = scalar_lea.vmem %s276, 4 [#allocation3]
        %v381 = vld [vmem:[%s380] sm:$0xf]
        %v383 = vsel %vm334, %v381, 0
        %385 = vmatprep.subr.bf16.mxu0 0
        %386 = vmatpush1.bf16.msra.mxu0 %v330
        %387 = vmatprep.subr.bf16.mxu0 0
        %388 = vmatpush1.bf16.msra.mxu0 %v331
        %389 = vmatprep.subr.bf16.mxu0 0
        %390 = vmatpush1.bf16.msra.mxu0 0
        %391 = vmatprep.subr.bf16.mxu0 0
        %392 = vmatpush1.bf16.msra.mxu0 0
        %393 = vmatprep.subr.bf16.mxu0 0
        %394 = vmatpush1.bf16.msra.mxu0 0
        %395 = vmatprep.subr.bf16.mxu0 0
        %396 = vmatpush1.bf16.msra.mxu0 0
        %397 = vmatprep.subr.bf16.mxu0 0
        %398 = vmatpush1.bf16.msra.mxu0 0
        %399 = vmatprep.subr.bf16.mxu0 0
        %400 = vmatpush1.bf16.msra.mxu0 0
        %401 = vmatprep.subr.bf16.mxu0 0
        %402 = vmatpush1.bf16.msra.mxu0 0
        %403 = vmatprep.subr.bf16.mxu0 0
        %404 = vmatpush1.bf16.msra.mxu0 0
        %405 = vmatprep.subr.bf16.mxu0 0
        %406 = vmatpush1.bf16.msra.mxu0 0
        %407 = vmatprep.subr.bf16.mxu0 0
        %408 = vmatpush1.bf16.msra.mxu0 0
        %409 = vmatprep.subr.bf16.mxu0 0
        %410 = vmatpush1.bf16.msra.mxu0 0
        %411 = vmatprep.subr.bf16.mxu0 0
        %412 = vmatpush1.bf16.msra.mxu0 0
        %413 = vmatprep.subr.bf16.mxu0 0
        %414 = vmatpush1.bf16.msra.mxu0 0
        %415 = vmatprep.subr.bf16.mxu0 0
        %416 = vmatpush1.bf16.msra.mxu0 0
        %417 = vmatprep.mubr.bf16.mxu0 0
        %418 = vmatmul.mubr.bf16.gmra.mrb[0].mxu0 %v383
        %v419 = vpop.f32.mrb[0].mxu0
        %v420 = vadd.f32 %v320, %v419
        %v421 = vpop.f32.mrb[0].mxu0
        %v422 = vpop.f32.mrb[0].mxu0
        %v423 = vpop.f32.mrb[0].mxu0
        %424 = vdwg.mxu0
        %v425 = vpack.c.bf16 %v420, %v420
        %s426 = scalar_lea.vmem [#allocation2], 4
        %427 = vst [vmem:[%s426] sm:$0xf] %v425
        %s428 = scalar_lea.vmem %s276, 8 [#allocation3]
        %v429 = vld [vmem:[%s428] sm:$0xf]
        %v431 = vsel %vm334, %v429, 0
        %433 = vmatprep.subr.bf16.mxu0 0
        %434 = vmatpush1.bf16.msra.mxu0 %v330
        %435 = vmatprep.subr.bf16.mxu0 0
        %436 = vmatpush1.bf16.msra.mxu0 %v331
        %437 = vmatprep.subr.bf16.mxu0 0
        %438 = vmatpush1.bf16.msra.mxu0 0
        %439 = vmatprep.subr.bf16.mxu0 0
        %440 = vmatpush1.bf16.msra.mxu0 0
        %441 = vmatprep.subr.bf16.mxu0 0
        %442 = vmatpush1.bf16.msra.mxu0 0
        %443 = vmatprep.subr.bf16.mxu0 0
        %444 = vmatpush1.bf16.msra.mxu0 0
        %445 = vmatprep.subr.bf16.mxu0 0
        %446 = vmatpush1.bf16.msra.mxu0 0
        %447 = vmatprep.subr.bf16.mxu0 0
        %448 = vmatpush1.bf16.msra.mxu0 0
        %449 = vmatprep.subr.bf16.mxu0 0
        %450 = vmatpush1.bf16.msra.mxu0 0
        %451 = vmatprep.subr.bf16.mxu0 0
        %452 = vmatpush1.bf16.msra.mxu0 0
        %453 = vmatprep.subr.bf16.mxu0 0
        %454 = vmatpush1.bf16.msra.mxu0 0
        %455 = vmatprep.subr.bf16.mxu0 0
        %456 = vmatpush1.bf16.msra.mxu0 0
        %457 = vmatprep.subr.bf16.mxu0 0
        %458 = vmatpush1.bf16.msra.mxu0 0
        %459 = vmatprep.subr.bf16.mxu0 0
        %460 = vmatpush1.bf16.msra.mxu0 0
        %461 = vmatprep.subr.bf16.mxu0 0
        %462 = vmatpush1.bf16.msra.mxu0 0
        %463 = vmatprep.subr.bf16.mxu0 0
        %464 = vmatpush1.bf16.msra.mxu0 0
        %465 = vmatprep.mubr.bf16.mxu0 0
        %466 = vmatmul.mubr.bf16.gmra.mrb[0].mxu0 %v431
        %v467 = vpop.f32.mrb[0].mxu0
        %v468 = vadd.f32 %v320, %v467
        %v469 = vpop.f32.mrb[0].mxu0
        %v470 = vpop.f32.mrb[0].mxu0
        %v471 = vpop.f32.mrb[0].mxu0
        %472 = vdwg.mxu0
        %v473 = vpack.c.bf16 %v468, %v468
        %s474 = scalar_lea.vmem [#allocation2], 8
        %475 = vst [vmem:[%s474] sm:$0xf] %v473
        %s476 = scalar_lea.vmem %s276, 12 [#allocation3]
        %v477 = vld [vmem:[%s476] sm:$0xf]
        %v479 = vsel %vm334, %v477, 0
        %481 = vmatprep.subr.bf16.mxu0 0
        %482 = vmatpush1.bf16.msra.mxu0 %v330
        %483 = vmatprep.subr.bf16.mxu0 0
        %484 = vmatpush1.bf16.msra.mxu0 %v331
        %485 = vmatprep.subr.bf16.mxu0 0
        %486 = vmatpush1.bf16.msra.mxu0 0
        %487 = vmatprep.subr.bf16.mxu0 0
        %488 = vmatpush1.bf16.msra.mxu0 0
        %489 = vmatprep.subr.bf16.mxu0 0
        %490 = vmatpush1.bf16.msra.mxu0 0
        %491 = vmatprep.subr.bf16.mxu0 0
        %492 = vmatpush1.bf16.msra.mxu0 0
        %493 = vmatprep.subr.bf16.mxu0 0
        %494 = vmatpush1.bf16.msra.mxu0 0
        %495 = vmatprep.subr.bf16.mxu0 0
        %496 = vmatpush1.bf16.msra.mxu0 0
        %497 = vmatprep.subr.bf16.mxu0 0
        %498 = vmatpush1.bf16.msra.mxu0 0
        %499 = vmatprep.subr.bf16.mxu0 0
        %500 = vmatpush1.bf16.msra.mxu0 0
        %501 = vmatprep.subr.bf16.mxu0 0
        %502 = vmatpush1.bf16.msra.mxu0 0
        %503 = vmatprep.subr.bf16.mxu0 0
        %504 = vmatpush1.bf16.msra.mxu0 0
        %505 = vmatprep.subr.bf16.mxu0 0
        %506 = vmatpush1.bf16.msra.mxu0 0
        %507 = vmatprep.subr.bf16.mxu0 0
        %508 = vmatpush1.bf16.msra.mxu0 0
        %509 = vmatprep.subr.bf16.mxu0 0
        %510 = vmatpush1.bf16.msra.mxu0 0
        %511 = vmatprep.subr.bf16.mxu0 0
        %512 = vmatpush1.bf16.msra.mxu0 0
        %513 = vmatprep.mubr.bf16.mxu0 0
        %514 = vmatmul.mubr.bf16.gmra.mrb[0].mxu0 %v479
        %v515 = vpop.f32.mrb[0].mxu0
        %v516 = vadd.f32 %v320, %v515
        %v517 = vpop.f32.mrb[0].mxu0
        %v518 = vpop.f32.mrb[0].mxu0
        %v519 = vpop.f32.mrb[0].mxu0
        %520 = vdwg.mxu0
        %v521 = vpack.c.bf16 %v516, %v516
        %s522 = scalar_lea.vmem [#allocation2], 12
        %523 = vst [vmem:[%s522] sm:$0xf] %v521
        %s524 = scalar_lea.vmem %s276, 16 [#allocation3]
        %v525 = vld [vmem:[%s524] sm:$0xf]
        %v527 = vsel %vm334, %v525, 0
        %529 = vmatprep.subr.bf16.mxu0 0
        %530 = vmatpush1.bf16.msra.mxu0 %v330
        %531 = vmatprep.subr.bf16.mxu0 0
        %532 = vmatpush1.bf16.msra.mxu0 %v331
        %533 = vmatprep.subr.bf16.mxu0 0
        %534 = vmatpush1.bf16.msra.mxu0 0
        %535 = vmatprep.subr.bf16.mxu0 0
        %536 = vmatpush1.bf16.msra.mxu0 0
        %537 = vmatprep.subr.bf16.mxu0 0
        %538 = vmatpush1.bf16.msra.mxu0 0
        %539 = vmatprep.subr.bf16.mxu0 0
        %540 = vmatpush1.bf16.msra.mxu0 0
        %541 = vmatprep.subr.bf16.mxu0 0
        %542 = vmatpush1.bf16.msra.mxu0 0
        %543 = vmatprep.subr.bf16.mxu0 0
        %544 = vmatpush1.bf16.msra.mxu0 0
        %545 = vmatprep.subr.bf16.mxu0 0
        %546 = vmatpush1.bf16.msra.mxu0 0
        %547 = vmatprep.subr.bf16.mxu0 0
        %548 = vmatpush1.bf16.msra.mxu0 0
        %549 = vmatprep.subr.bf16.mxu0 0
        %550 = vmatpush1.bf16.msra.mxu0 0
        %551 = vmatprep.subr.bf16.mxu0 0
        %552 = vmatpush1.bf16.msra.mxu0 0
        %553 = vmatprep.subr.bf16.mxu0 0
        %554 = vmatpush1.bf16.msra.mxu0 0
        %555 = vmatprep.subr.bf16.mxu0 0
        %556 = vmatpush1.bf16.msra.mxu0 0
        %557 = vmatprep.subr.bf16.mxu0 0
        %558 = vmatpush1.bf16.msra.mxu0 0
        %559 = vmatprep.subr.bf16.mxu0 0
        %560 = vmatpush1.bf16.msra.mxu0 0
        %561 = vmatprep.mubr.bf16.mxu0 0
        %562 = vmatmul.mubr.bf16.gmra.mrb[0].mxu0 %v527
        %v563 = vpop.f32.mrb[0].mxu0
        %v564 = vadd.f32 %v320, %v563
        %v565 = vpop.f32.mrb[0].mxu0
        %v566 = vpop.f32.mrb[0].mxu0
        %v567 = vpop.f32.mrb[0].mxu0
        %568 = vdwg.mxu0
        %v569 = vpack.c.bf16 %v564, %v564
        %s570 = scalar_lea.vmem [#allocation2], 16
        %571 = vst [vmem:[%s570] sm:$0xf] %v569
        %s572 = scalar_lea.vmem %s276, 20 [#allocation3]
        %v573 = vld [vmem:[%s572] sm:$0xf]
        %v575 = vsel %vm334, %v573, 0
        %577 = vmatprep.subr.bf16.mxu0 0
        %578 = vmatpush1.bf16.msra.mxu0 %v330
        %579 = vmatprep.subr.bf16.mxu0 0
        %580 = vmatpush1.bf16.msra.mxu0 %v331
        %581 = vmatprep.subr.bf16.mxu0 0
        %582 = vmatpush1.bf16.msra.mxu0 0
        %583 = vmatprep.subr.bf16.mxu0 0
        %584 = vmatpush1.bf16.msra.mxu0 0
        %585 = vmatprep.subr.bf16.mxu0 0
        %586 = vmatpush1.bf16.msra.mxu0 0
        %587 = vmatprep.subr.bf16.mxu0 0
        %588 = vmatpush1.bf16.msra.mxu0 0
        %589 = vmatprep.subr.bf16.mxu0 0
        %590 = vmatpush1.bf16.msra.mxu0 0
        %591 = vmatprep.subr.bf16.mxu0 0
        %592 = vmatpush1.bf16.msra.mxu0 0
        %593 = vmatprep.subr.bf16.mxu0 0
        %594 = vmatpush1.bf16.msra.mxu0 0
        %595 = vmatprep.subr.bf16.mxu0 0
        %596 = vmatpush1.bf16.msra.mxu0 0
        %597 = vmatprep.subr.bf16.mxu0 0
        %598 = vmatpush1.bf16.msra.mxu0 0
        %599 = vmatprep.subr.bf16.mxu0 0
        %600 = vmatpush1.bf16.msra.mxu0 0
        %601 = vmatprep.subr.bf16.mxu0 0
        %602 = vmatpush1.bf16.msra.mxu0 0
        %603 = vmatprep.subr.bf16.mxu0 0
        %604 = vmatpush1.bf16.msra.mxu0 0
        %605 = vmatprep.subr.bf16.mxu0 0
        %606 = vmatpush1.bf16.msra.mxu0 0
        %607 = vmatprep.subr.bf16.mxu0 0
        %608 = vmatpush1.bf16.msra.mxu0 0
        %609 = vmatprep.mubr.bf16.mxu0 0
        %610 = vmatmul.mubr.bf16.gmra.mrb[0].mxu0 %v575
        %v611 = vpop.f32.mrb[0].mxu0
        %v612 = vadd.f32 %v320, %v611
        %v613 = vpop.f32.mrb[0].mxu0
        %v614 = vpop.f32.mrb[0].mxu0
        %v615 = vpop.f32.mrb[0].mxu0
        %616 = vdwg.mxu0
        %v617 = vpack.c.bf16 %v612, %v612
        %s618 = scalar_lea.vmem [#allocation2], 20
        %619 = vst [vmem:[%s618] sm:$0xf] %v617
        %s620 = scalar_lea.vmem %s276, 24 [#allocation3]
        %v621 = vld [vmem:[%s620] sm:$0xf]
        %v623 = vsel %vm334, %v621, 0
        %625 = vmatprep.subr.bf16.mxu0 0
        %626 = vmatpush1.bf16.msra.mxu0 %v330
        %627 = vmatprep.subr.bf16.mxu0 0
        %628 = vmatpush1.bf16.msra.mxu0 %v331
        %629 = vmatprep.subr.bf16.mxu0 0
        %630 = vmatpush1.bf16.msra.mxu0 0
        %631 = vmatprep.subr.bf16.mxu0 0
        %632 = vmatpush1.bf16.msra.mxu0 0
        %633 = vmatprep.subr.bf16.mxu0 0
        %634 = vmatpush1.bf16.msra.mxu0 0
        %635 = vmatprep.subr.bf16.mxu0 0
        %636 = vmatpush1.bf16.msra.mxu0 0
        %637 = vmatprep.subr.bf16.mxu0 0
        %638 = vmatpush1.bf16.msra.mxu0 0
        %639 = vmatprep.subr.bf16.mxu0 0
        %640 = vmatpush1.bf16.msra.mxu0 0
        %641 = vmatprep.subr.bf16.mxu0 0
        %642 = vmatpush1.bf16.msra.mxu0 0
        %643 = vmatprep.subr.bf16.mxu0 0
        %644 = vmatpush1.bf16.msra.mxu0 0
        %645 = vmatprep.subr.bf16.mxu0 0
        %646 = vmatpush1.bf16.msra.mxu0 0
        %647 = vmatprep.subr.bf16.mxu0 0
        %648 = vmatpush1.bf16.msra.mxu0 0
        %649 = vmatprep.subr.bf16.mxu0 0
        %650 = vmatpush1.bf16.msra.mxu0 0
        %651 = vmatprep.subr.bf16.mxu0 0
        %652 = vmatpush1.bf16.msra.mxu0 0
        %653 = vmatprep.subr.bf16.mxu0 0
        %654 = vmatpush1.bf16.msra.mxu0 0
        %655 = vmatprep.subr.bf16.mxu0 0
        %656 = vmatpush1.bf16.msra.mxu0 0
        %657 = vmatprep.mubr.bf16.mxu0 0
        %658 = vmatmul.mubr.bf16.gmra.mrb[0].mxu0 %v623
        %v659 = vpop.f32.mrb[0].mxu0
        %v660 = vadd.f32 %v320, %v659
        %v661 = vpop.f32.mrb[0].mxu0
        %v662 = vpop.f32.mrb[0].mxu0
        %v663 = vpop.f32.mrb[0].mxu0
        %664 = vdwg.mxu0
        %v665 = vpack.c.bf16 %v660, %v660
        %s666 = scalar_lea.vmem [#allocation2], 24
        %667 = vst [vmem:[%s666] sm:$0xf] %v665
        %s668 = scalar_lea.vmem %s276, 28 [#allocation3]
        %v669 = vld [vmem:[%s668] sm:$0xf]
        %v671 = vsel %vm334, %v669, 0
        %673 = vmatprep.subr.bf16.mxu0 0
        %674 = vmatpush1.bf16.msra.mxu0 %v330
        %675 = vmatprep.subr.bf16.mxu0 0
        %676 = vmatpush1.bf16.msra.mxu0 %v331
        %677 = vmatprep.subr.bf16.mxu0 0
        %678 = vmatpush1.bf16.msra.mxu0 0
        %679 = vmatprep.subr.bf16.mxu0 0
        %680 = vmatpush1.bf16.msra.mxu0 0
        %681 = vmatprep.subr.bf16.mxu0 0
        %682 = vmatpush1.bf16.msra.mxu0 0
        %683 = vmatprep.subr.bf16.mxu0 0
        %684 = vmatpush1.bf16.msra.mxu0 0
        %685 = vmatprep.subr.bf16.mxu0 0
        %686 = vmatpush1.bf16.msra.mxu0 0
        %687 = vmatprep.subr.bf16.mxu0 0
        %688 = vmatpush1.bf16.msra.mxu0 0
        %689 = vmatprep.subr.bf16.mxu0 0
        %690 = vmatpush1.bf16.msra.mxu0 0
        %691 = vmatprep.subr.bf16.mxu0 0
        %692 = vmatpush1.bf16.msra.mxu0 0
        %693 = vmatprep.subr.bf16.mxu0 0
        %694 = vmatpush1.bf16.msra.mxu0 0
        %695 = vmatprep.subr.bf16.mxu0 0
        %696 = vmatpush1.bf16.msra.mxu0 0
        %697 = vmatprep.subr.bf16.mxu0 0
        %698 = vmatpush1.bf16.msra.mxu0 0
        %699 = vmatprep.subr.bf16.mxu0 0
        %700 = vmatpush1.bf16.msra.mxu0 0
        %701 = vmatprep.subr.bf16.mxu0 0
        %702 = vmatpush1.bf16.msra.mxu0 0
        %703 = vmatprep.subr.bf16.mxu0 0
        %704 = vmatpush1.bf16.msra.mxu0 0
        %705 = vmatprep.mubr.bf16.mxu0 0
        %706 = vmatmul.mubr.bf16.gmra.mrb[0].mxu0 %v671
        %v707 = vpop.f32.mrb[0].mxu0
        %v708 = vadd.f32 %v320, %v707
        %v709 = vpop.f32.mrb[0].mxu0
        %v710 = vpop.f32.mrb[0].mxu0
        %v711 = vpop.f32.mrb[0].mxu0
        %712 = vdwg.mxu0
        %v713 = vpack.c.bf16 %v708, %v708
        %s714 = scalar_lea.vmem [#allocation2], 28
        %715 = vst [vmem:[%s714] sm:$0xf] %v713
        %v716 = vld [vmem:[%s308] sm:$0xff]
        %v717 = vld [vmem:[%s3] sm:$0xf]
        %v718 = vld [vmem:[%s3 + $0x4] sm:$0xf]
        %v719 = vld [vmem:[%s3 + $0x8] sm:$0xf]
        %v720 = vld [vmem:[%s3 + $0xc] sm:$0xf]
        %v721 = vld [vmem:[#allocation2] sm:$0xf]
        %v726 = vunpack.c.l.b16 %v717
        %v727 = vunpack.c.l.b16 %v718
        %v728 = vunpack.c.l.b16 %v719
        %v729 = vunpack.c.l.b16 %v720
        %v730 = vpack.c.b16 %v727, %v726
        %v731 = vpack.c.b16 %v729, %v728
        %v735 = vsel %vm334, 0, 0
        %737 = vmatprep.subr.bf16.mxu0 0
        %738 = vmatpush1.bf16.msra.mxu0 %v730
        %739 = vmatprep.subr.bf16.mxu0 0
        %740 = vmatpush1.bf16.msra.mxu0 %v731
        %741 = vmatprep.subr.bf16.mxu0 0
        %742 = vmatpush1.bf16.msra.mxu0 0
        %743 = vmatprep.subr.bf16.mxu0 0
        %744 = vmatpush1.bf16.msra.mxu0 0
        %745 = vmatprep.subr.bf16.mxu0 0
        %746 = vmatpush1.bf16.msra.mxu0 0
        %747 = vmatprep.subr.bf16.mxu0 0
        %748 = vmatpush1.bf16.msra.mxu0 0
        %749 = vmatprep.subr.bf16.mxu0 0
        %750 = vmatpush1.bf16.msra.mxu0 0
        %751 = vmatprep.subr.bf16.mxu0 0
        %752 = vmatpush1.bf16.msra.mxu0 0
        %753 = vmatprep.subr.bf16.mxu0 0
        %754 = vmatpush1.bf16.msra.mxu0 0
        %755 = vmatprep.subr.bf16.mxu0 0
        %756 = vmatpush1.bf16.msra.mxu0 0
        %757 = vmatprep.subr.bf16.mxu0 0
        %758 = vmatpush1.bf16.msra.mxu0 0
        %759 = vmatprep.subr.bf16.mxu0 0
        %760 = vmatpush1.bf16.msra.mxu0 0
        %761 = vmatprep.subr.bf16.mxu0 0
        %762 = vmatpush1.bf16.msra.mxu0 0
        %763 = vmatprep.subr.bf16.mxu0 0
        %764 = vmatpush1.bf16.msra.mxu0 0
        %765 = vmatprep.subr.bf16.mxu0 0
        %766 = vmatpush1.bf16.msra.mxu0 0
        %767 = vmatprep.subr.bf16.mxu0 0
        %768 = vmatpush1.bf16.msra.mxu0 0
        %769 = vmatprep.mubr.bf16.mxu0 0
        %770 = vmatmul.mubr.bf16.gmra.mrb[0].mxu0 %v735
        %v771 = vpop.f32.mrb[0].mxu0
        %v772 = vadd.f32 0.0, %v771
        %v773 = vpop.f32.mrb[0].mxu0
        %v774 = vpop.f32.mrb[0].mxu0
        %v775 = vpop.f32.mrb[0].mxu0
        %776 = vdwg.mxu0
        %v777 = vunpack.c.l.bf16 %v721
        %v778 = vadd.f32 %v777, %v772
        %v779 = vxor.u32 %v778, 2147483648
        %v780 = vmul.f32 %v779, 1.442695
        %v781 = vpow.pop %v780
        %v782 = vadd.f32 %v781, 1.0
        %v783 = vrcp.pop %v782
        %v784 = vmul.f32 1.0, %v783
        %v785 = vtanh.pop %v778
        %v786 = vmul.f32 %v784, 0.0
        %788 = vrot.lane.b32.xlu0 %v785, 32
        %v789 = vpop.permute.xlu0 %788
        %v791 = vmul.f32 %v784, %v789
        %793 = vrot.lane.b32.xlu0 %v791, 32
        %v794 = vpop.permute.xlu0 %793
        %v796 = vadd.f32 %v786, %v794
        %v797 = vtanh.pop %v796
        %799 = vrot.lane.b32.xlu0 %v797, 32
        %v800 = vpop.permute.xlu0 %799
        %v802 = vmul.f32 %v784, %v800
        %vm803 = vcmask 130048
        %v804 = vsel %vm803, 0, 7
        %v805 = vlaneseq
        %v806 = vshrl.u32 %v805, 7
        %v807 = vsub.s32 0, %v806
        %v808 = vrot.slane %v804, %v807
        %809 = vset.pattern.permute.xlu0 0
        %810 = vperm.xlu0 %809, %v716
        %v811 = vpop.permute.xlu0 %810
        %vm812 = vcmp.lt.s32.totalorder %v808, %v811
        %814 = vrot.lane.b32.xlu0 %v802, 64
        %v815 = vpop.permute.xlu0 %814
        %v817 = vsel %vm812, %v815, 0.0
        %819 = vrot.lane.b32.xlu0 %v796, 96
        %v820 = vpop.permute.xlu0 %819
        %v822 = vsel %vm812, %v820, 0.0
        %v823 = vld [vmem:[%s426] sm:$0xf]
        %v824 = vpack.c.bf16 %v817, %v817
        %v826 = vsel %vm334, %v824, 0
        %828 = vmatprep.subr.bf16.mxu0 0
        %829 = vmatpush1.bf16.msra.mxu0 %v730
        %830 = vmatprep.subr.bf16.mxu0 0
        %831 = vmatpush1.bf16.msra.mxu0 %v731
        %832 = vmatprep.subr.bf16.mxu0 0
        %833 = vmatpush1.bf16.msra.mxu0 0
        %834 = vmatprep.subr.bf16.mxu0 0
        %835 = vmatpush1.bf16.msra.mxu0 0
        %836 = vmatprep.subr.bf16.mxu0 0
        %837 = vmatpush1.bf16.msra.mxu0 0
        %838 = vmatprep.subr.bf16.mxu0 0
        %839 = vmatpush1.bf16.msra.mxu0 0
        %840 = vmatprep.subr.bf16.mxu0 0
        %841 = vmatpush1.bf16.msra.mxu0 0
        %842 = vmatprep.subr.bf16.mxu0 0
        %843 = vmatpush1.bf16.msra.mxu0 0
        %844 = vmatprep.subr.bf16.mxu0 0
        %845 = vmatpush1.bf16.msra.mxu0 0
        %846 = vmatprep.subr.bf16.mxu0 0
        %847 = vmatpush1.bf16.msra.mxu0 0
        %848 = vmatprep.subr.bf16.mxu0 0
        %849 = vmatpush1.bf16.msra.mxu0 0
        %850 = vmatprep.subr.bf16.mxu0 0
        %851 = vmatpush1.bf16.msra.mxu0 0
        %852 = vmatprep.subr.bf16.mxu0 0
        %853 = vmatpush1.bf16.msra.mxu0 0
        %854 = vmatprep.subr.bf16.mxu0 0
        %855 = vmatpush1.bf16.msra.mxu0 0
        %856 = vmatprep.subr.bf16.mxu0 0
        %857 = vmatpush1.bf16.msra.mxu0 0
        %858 = vmatprep.subr.bf16.mxu0 0
        %859 = vmatpush1.bf16.msra.mxu0 0
        %860 = vmatprep.mubr.bf16.mxu0 0
        %861 = vmatmul.mubr.bf16.gmra.mrb[0].mxu0 %v826
        %v862 = vpop.f32.mrb[0].mxu0
        %v863 = vadd.f32 0.0, %v862
        %v864 = vpop.f32.mrb[0].mxu0
        %v865 = vpop.f32.mrb[0].mxu0
        %v866 = vpop.f32.mrb[0].mxu0
        %867 = vdwg.mxu0
        %v868 = vunpack.c.l.bf16 %v823
        %v869 = vadd.f32 %v868, %v863
        %v870 = vxor.u32 %v869, 2147483648
        %v871 = vmul.f32 %v870, 1.442695
        %v872 = vpow.pop %v871
        %v873 = vadd.f32 %v872, 1.0
        %v874 = vrcp.pop %v873
        %v875 = vmul.f32 1.0, %v874
        %v876 = vtanh.pop %v869
        %878 = vrot.lane.b32.xlu0 %v822, 32
        %v879 = vpop.permute.xlu0 %878
        %v881 = vmul.f32 %v875, %v879
        %883 = vrot.lane.b32.xlu0 %v876, 32
        %v884 = vpop.permute.xlu0 %883
        %v886 = vmul.f32 %v875, %v884
        %888 = vrot.lane.b32.xlu0 %v886, 32
        %v889 = vpop.permute.xlu0 %888
        %v891 = vadd.f32 %v881, %v889
        %v892 = vtanh.pop %v891
        %894 = vrot.lane.b32.xlu0 %v892, 32
        %v895 = vpop.permute.xlu0 %894
        %v897 = vmul.f32 %v875, %v895
        %v898 = vsel %vm803, 1, 6
        %v899 = vlaneseq
        %v900 = vshrl.u32 %v899, 7
        %v901 = vsub.s32 0, %v900
        %v902 = vrot.slane %v898, %v901
        %vm903 = vcmp.lt.s32.totalorder %v902, %v811
        %905 = vrot.lane.b32.xlu0 %v897, 64
        %v906 = vpop.permute.xlu0 %905
        %v908 = vsel %vm903, %v906, %v817
        %910 = vrot.lane.b32.xlu0 %v891, 96
        %v911 = vpop.permute.xlu0 %910
        %v913 = vsel %vm903, %v911, %v822
        %v914 = vld [vmem:[%s474] sm:$0xf]
        %v915 = vpack.c.bf16 %v908, %v908
        %v917 = vsel %vm334, %v915, 0
        %919 = vmatprep.subr.bf16.mxu0 0
        %920 = vmatpush1.bf16.msra.mxu0 %v730
        %921 = vmatprep.subr.bf16.mxu0 0
        %922 = vmatpush1.bf16.msra.mxu0 %v731
        %923 = vmatprep.subr.bf16.mxu0 0
        %924 = vmatpush1.bf16.msra.mxu0 0
        %925 = vmatprep.subr.bf16.mxu0 0
        %926 = vmatpush1.bf16.msra.mxu0 0
        %927 = vmatprep.subr.bf16.mxu0 0
        %928 = vmatpush1.bf16.msra.mxu0 0
        %929 = vmatprep.subr.bf16.mxu0 0
        %930 = vmatpush1.bf16.msra.mxu0 0
        %931 = vmatprep.subr.bf16.mxu0 0
        %932 = vmatpush1.bf16.msra.mxu0 0
        %933 = vmatprep.subr.bf16.mxu0 0
        %934 = vmatpush1.bf16.msra.mxu0 0
        %935 = vmatprep.subr.bf16.mxu0 0
        %936 = vmatpush1.bf16.msra.mxu0 0
        %937 = vmatprep.subr.bf16.mxu0 0
        %938 = vmatpush1.bf16.msra.mxu0 0
        %939 = vmatprep.subr.bf16.mxu0 0
        %940 = vmatpush1.bf16.msra.mxu0 0
        %941 = vmatprep.subr.bf16.mxu0 0
        %942 = vmatpush1.bf16.msra.mxu0 0
        %943 = vmatprep.subr.bf16.mxu0 0
        %944 = vmatpush1.bf16.msra.mxu0 0
        %945 = vmatprep.subr.bf16.mxu0 0
        %946 = vmatpush1.bf16.msra.mxu0 0
        %947 = vmatprep.subr.bf16.mxu0 0
        %948 = vmatpush1.bf16.msra.mxu0 0
        %949 = vmatprep.subr.bf16.mxu0 0
        %950 = vmatpush1.bf16.msra.mxu0 0
        %951 = vmatprep.mubr.bf16.mxu0 0
        %952 = vmatmul.mubr.bf16.gmra.mrb[0].mxu0 %v917
        %v953 = vpop.f32.mrb[0].mxu0
        %v954 = vadd.f32 0.0, %v953
        %v955 = vpop.f32.mrb[0].mxu0
        %v956 = vpop.f32.mrb[0].mxu0
        %v957 = vpop.f32.mrb[0].mxu0
        %958 = vdwg.mxu0
        %v959 = vunpack.c.l.bf16 %v914
        %v960 = vadd.f32 %v959, %v954
        %v961 = vxor.u32 %v960, 2147483648
        %v962 = vmul.f32 %v961, 1.442695
        %v963 = vpow.pop %v962
        %v964 = vadd.f32 %v963, 1.0
        %v965 = vrcp.pop %v964
        %v966 = vmul.f32 1.0, %v965
        %v967 = vtanh.pop %v960
        %969 = vrot.lane.b32.xlu0 %v913, 32
        %v970 = vpop.permute.xlu0 %969
        %v972 = vmul.f32 %v966, %v970
        %974 = vrot.lane.b32.xlu0 %v967, 32
        %v975 = vpop.permute.xlu0 %974
        %v977 = vmul.f32 %v966, %v975
        %979 = vrot.lane.b32.xlu0 %v977, 32
        %v980 = vpop.permute.xlu0 %979
        %v982 = vadd.f32 %v972, %v980
        %v983 = vtanh.pop %v982
        %985 = vrot.lane.b32.xlu0 %v983, 32
        %v986 = vpop.permute.xlu0 %985
        %v988 = vmul.f32 %v966, %v986
        %v989 = vsel %vm803, 2, 5
        %v990 = vlaneseq
        %v991 = vshrl.u32 %v990, 7
        %v992 = vsub.s32 0, %v991
        %v993 = vrot.slane %v989, %v992
        %vm994 = vcmp.lt.s32.totalorder %v993, %v811
        %996 = vrot.lane.b32.xlu0 %v988, 64
        %v997 = vpop.permute.xlu0 %996
        %v999 = vsel %vm994, %v997, %v908
        %1001 = vrot.lane.b32.xlu0 %v982, 96
        %v1002 = vpop.permute.xlu0 %1001
        %v1004 = vsel %vm994, %v1002, %v913
        %v1005 = vld [vmem:[%s522] sm:$0xf]
        %v1006 = vpack.c.bf16 %v999, %v999
        %v1008 = vsel %vm334, %v1006, 0
        %1010 = vmatprep.subr.bf16.mxu0 0
        %1011 = vmatpush1.bf16.msra.mxu0 %v730
        %1012 = vmatprep.subr.bf16.mxu0 0
        %1013 = vmatpush1.bf16.msra.mxu0 %v731
        %1014 = vmatprep.subr.bf16.mxu0 0
        %1015 = vmatpush1.bf16.msra.mxu0 0
        %1016 = vmatprep.subr.bf16.mxu0 0
        %1017 = vmatpush1.bf16.msra.mxu0 0
        %1018 = vmatprep.subr.bf16.mxu0 0
        %1019 = vmatpush1.bf16.msra.mxu0 0
        %1020 = vmatprep.subr.bf16.mxu0 0
        %1021 = vmatpush1.bf16.msra.mxu0 0
        %1022 = vmatprep.subr.bf16.mxu0 0
        %1023 = vmatpush1.bf16.msra.mxu0 0
        %1024 = vmatprep.subr.bf16.mxu0 0
        %1025 = vmatpush1.bf16.msra.mxu0 0
        %1026 = vmatprep.subr.bf16.mxu0 0
        %1027 = vmatpush1.bf16.msra.mxu0 0
        %1028 = vmatprep.subr.bf16.mxu0 0
        %1029 = vmatpush1.bf16.msra.mxu0 0
        %1030 = vmatprep.subr.bf16.mxu0 0
        %1031 = vmatpush1.bf16.msra.mxu0 0
        %1032 = vmatprep.subr.bf16.mxu0 0
        %1033 = vmatpush1.bf16.msra.mxu0 0
        %1034 = vmatprep.subr.bf16.mxu0 0
        %1035 = vmatpush1.bf16.msra.mxu0 0
        %1036 = vmatprep.subr.bf16.mxu0 0
        %1037 = vmatpush1.bf16.msra.mxu0 0
        %1038 = vmatprep.subr.bf16.mxu0 0
        %1039 = vmatpush1.bf16.msra.mxu0 0
        %1040 = vmatprep.subr.bf16.mxu0 0
        %1041 = vmatpush1.bf16.msra.mxu0 0
        %1042 = vmatprep.mubr.bf16.mxu0 0
        %1043 = vmatmul.mubr.bf16.gmra.mrb[0].mxu0 %v1008
        %v1044 = vpop.f32.mrb[0].mxu0
        %v1045 = vadd.f32 0.0, %v1044
        %v1046 = vpop.f32.mrb[0].mxu0
        %v1047 = vpop.f32.mrb[0].mxu0
        %v1048 = vpop.f32.mrb[0].mxu0
        %1049 = vdwg.mxu0
        %v1050 = vunpack.c.l.bf16 %v1005
        %v1051 = vadd.f32 %v1050, %v1045
        %v1052 = vxor.u32 %v1051, 2147483648
        %v1053 = vmul.f32 %v1052, 1.442695
        %v1054 = vpow.pop %v1053
        %v1055 = vadd.f32 %v1054, 1.0
        %v1056 = vrcp.pop %v1055
        %v1057 = vmul.f32 1.0, %v1056
        %v1058 = vtanh.pop %v1051
        %1060 = vrot.lane.b32.xlu0 %v1004, 32
        %v1061 = vpop.permute.xlu0 %1060
        %v1063 = vmul.f32 %v1057, %v1061
        %1065 = vrot.lane.b32.xlu0 %v1058, 32
        %v1066 = vpop.permute.xlu0 %1065
        %v1068 = vmul.f32 %v1057, %v1066
        %1070 = vrot.lane.b32.xlu0 %v1068, 32
        %v1071 = vpop.permute.xlu0 %1070
        %v1073 = vadd.f32 %v1063, %v1071
        %v1074 = vtanh.pop %v1073
        %1076 = vrot.lane.b32.xlu0 %v1074, 32
        %v1077 = vpop.permute.xlu0 %1076
        %v1079 = vmul.f32 %v1057, %v1077
        %v1080 = vsel %vm803, 3, 4
        %v1081 = vlaneseq
        %v1082 = vshrl.u32 %v1081, 7
        %v1083 = vsub.s32 0, %v1082
        %v1084 = vrot.slane %v1080, %v1083
        %vm1085 = vcmp.lt.s32.totalorder %v1084, %v811
        %1087 = vrot.lane.b32.xlu0 %v1079, 64
        %v1088 = vpop.permute.xlu0 %1087
        %v1090 = vsel %vm1085, %v1088, %v999
        %1092 = vrot.lane.b32.xlu0 %v1073, 96
        %v1093 = vpop.permute.xlu0 %1092
        %v1095 = vsel %vm1085, %v1093, %v1004
        %v1096 = vld [vmem:[%s570] sm:$0xf]
        %v1097 = vpack.c.bf16 %v1090, %v1090
        %v1099 = vsel %vm334, %v1097, 0
        %1101 = vmatprep.subr.bf16.mxu0 0
        %1102 = vmatpush1.bf16.msra.mxu0 %v730
        %1103 = vmatprep.subr.bf16.mxu0 0
        %1104 = vmatpush1.bf16.msra.mxu0 %v731
        %1105 = vmatprep.subr.bf16.mxu0 0
        %1106 = vmatpush1.bf16.msra.mxu0 0
        %1107 = vmatprep.subr.bf16.mxu0 0
        %1108 = vmatpush1.bf16.msra.mxu0 0
        %1109 = vmatprep.subr.bf16.mxu0 0
        %1110 = vmatpush1.bf16.msra.mxu0 0
        %1111 = vmatprep.subr.bf16.mxu0 0
        %1112 = vmatpush1.bf16.msra.mxu0 0
        %1113 = vmatprep.subr.bf16.mxu0 0
        %1114 = vmatpush1.bf16.msra.mxu0 0
        %1115 = vmatprep.subr.bf16.mxu0 0
        %1116 = vmatpush1.bf16.msra.mxu0 0
        %1117 = vmatprep.subr.bf16.mxu0 0
        %1118 = vmatpush1.bf16.msra.mxu0 0
        %1119 = vmatprep.subr.bf16.mxu0 0
        %1120 = vmatpush1.bf16.msra.mxu0 0
        %1121 = vmatprep.subr.bf16.mxu0 0
        %1122 = vmatpush1.bf16.msra.mxu0 0
        %1123 = vmatprep.subr.bf16.mxu0 0
        %1124 = vmatpush1.bf16.msra.mxu0 0
        %1125 = vmatprep.subr.bf16.mxu0 0
        %1126 = vmatpush1.bf16.msra.mxu0 0
        %1127 = vmatprep.subr.bf16.mxu0 0
        %1128 = vmatpush1.bf16.msra.mxu0 0
        %1129 = vmatprep.subr.bf16.mxu0 0
        %1130 = vmatpush1.bf16.msra.mxu0 0
        %1131 = vmatprep.subr.bf16.mxu0 0
        %1132 = vmatpush1.bf16.msra.mxu0 0
        %1133 = vmatprep.mubr.bf16.mxu0 0
        %1134 = vmatmul.mubr.bf16.gmra.mrb[0].mxu0 %v1099
        %v1135 = vpop.f32.mrb[0].mxu0
        %v1136 = vadd.f32 0.0, %v1135
        %v1137 = vpop.f32.mrb[0].mxu0
        %v1138 = vpop.f32.mrb[0].mxu0
        %v1139 = vpop.f32.mrb[0].mxu0
        %1140 = vdwg.mxu0
        %v1141 = vunpack.c.l.bf16 %v1096
        %v1142 = vadd.f32 %v1141, %v1136
        %v1143 = vxor.u32 %v1142, 2147483648
        %v1144 = vmul.f32 %v1143, 1.442695
        %v1145 = vpow.pop %v1144
        %v1146 = vadd.f32 %v1145, 1.0
        %v1147 = vrcp.pop %v1146
        %v1148 = vmul.f32 1.0, %v1147
        %v1149 = vtanh.pop %v1142
        %1151 = vrot.lane.b32.xlu0 %v1095, 32
        %v1152 = vpop.permute.xlu0 %1151
        %v1154 = vmul.f32 %v1148, %v1152
        %1156 = vrot.lane.b32.xlu0 %v1149, 32
        %v1157 = vpop.permute.xlu0 %1156
        %v1159 = vmul.f32 %v1148, %v1157
        %1161 = vrot.lane.b32.xlu0 %v1159, 32
        %v1162 = vpop.permute.xlu0 %1161
        %v1164 = vadd.f32 %v1154, %v1162
        %v1165 = vtanh.pop %v1164
        %1167 = vrot.lane.b32.xlu0 %v1165, 32
        %v1168 = vpop.permute.xlu0 %1167
        %v1170 = vmul.f32 %v1148, %v1168
        %v1171 = vsel %vm803, 4, 3
        %v1172 = vlaneseq
        %v1173 = vshrl.u32 %v1172, 7
        %v1174 = vsub.s32 0, %v1173
        %v1175 = vrot.slane %v1171, %v1174
        %vm1176 = vcmp.lt.s32.totalorder %v1175, %v811
        %1178 = vrot.lane.b32.xlu0 %v1170, 64
        %v1179 = vpop.permute.xlu0 %1178
        %v1181 = vsel %vm1176, %v1179, %v1090
        %1183 = vrot.lane.b32.xlu0 %v1164, 96
        %v1184 = vpop.permute.xlu0 %1183
        %v1186 = vsel %vm1176, %v1184, %v1095
        %v1187 = vld [vmem:[%s618] sm:$0xf]
        %v1188 = vpack.c.bf16 %v1181, %v1181
        %v1190 = vsel %vm334, %v1188, 0
        %1192 = vmatprep.subr.bf16.mxu0 0
        %1193 = vmatpush1.bf16.msra.mxu0 %v730
        %1194 = vmatprep.subr.bf16.mxu0 0
        %1195 = vmatpush1.bf16.msra.mxu0 %v731
        %1196 = vmatprep.subr.bf16.mxu0 0
        %1197 = vmatpush1.bf16.msra.mxu0 0
        %1198 = vmatprep.subr.bf16.mxu0 0
        %1199 = vmatpush1.bf16.msra.mxu0 0
        %1200 = vmatprep.subr.bf16.mxu0 0
        %1201 = vmatpush1.bf16.msra.mxu0 0
        %1202 = vmatprep.subr.bf16.mxu0 0
        %1203 = vmatpush1.bf16.msra.mxu0 0
        %1204 = vmatprep.subr.bf16.mxu0 0
        %1205 = vmatpush1.bf16.msra.mxu0 0
        %1206 = vmatprep.subr.bf16.mxu0 0
        %1207 = vmatpush1.bf16.msra.mxu0 0
        %1208 = vmatprep.subr.bf16.mxu0 0
        %1209 = vmatpush1.bf16.msra.mxu0 0
        %1210 = vmatprep.subr.bf16.mxu0 0
        %1211 = vmatpush1.bf16.msra.mxu0 0
        %1212 = vmatprep.subr.bf16.mxu0 0
        %1213 = vmatpush1.bf16.msra.mxu0 0
        %1214 = vmatprep.subr.bf16.mxu0 0
        %1215 = vmatpush1.bf16.msra.mxu0 0
        %1216 = vmatprep.subr.bf16.mxu0 0
        %1217 = vmatpush1.bf16.msra.mxu0 0
        %1218 = vmatprep.subr.bf16.mxu0 0
        %1219 = vmatpush1.bf16.msra.mxu0 0
        %1220 = vmatprep.subr.bf16.mxu0 0
        %1221 = vmatpush1.bf16.msra.mxu0 0
        %1222 = vmatprep.subr.bf16.mxu0 0
        %1223 = vmatpush1.bf16.msra.mxu0 0
        %1224 = vmatprep.mubr.bf16.mxu0 0
        %1225 = vmatmul.mubr.bf16.gmra.mrb[0].mxu0 %v1190
        %v1226 = vpop.f32.mrb[0].mxu0
        %v1227 = vadd.f32 0.0, %v1226
        %v1228 = vpop.f32.mrb[0].mxu0
        %v1229 = vpop.f32.mrb[0].mxu0
        %v1230 = vpop.f32.mrb[0].mxu0
        %1231 = vdwg.mxu0
        %v1232 = vunpack.c.l.bf16 %v1187
        %v1233 = vadd.f32 %v1232, %v1227
        %v1234 = vxor.u32 %v1233, 2147483648
        %v1235 = vmul.f32 %v1234, 1.442695
        %v1236 = vpow.pop %v1235
        %v1237 = vadd.f32 %v1236, 1.0
        %v1238 = vrcp.pop %v1237
        %v1239 = vmul.f32 1.0, %v1238
        %v1240 = vtanh.pop %v1233
        %1242 = vrot.lane.b32.xlu0 %v1186, 32
        %v1243 = vpop.permute.xlu0 %1242
        %v1245 = vmul.f32 %v1239, %v1243
        %1247 = vrot.lane.b32.xlu0 %v1240, 32
        %v1248 = vpop.permute.xlu0 %1247
        %v1250 = vmul.f32 %v1239, %v1248
        %1252 = vrot.lane.b32.xlu0 %v1250, 32
        %v1253 = vpop.permute.xlu0 %1252
        %v1255 = vadd.f32 %v1245, %v1253
        %v1256 = vtanh.pop %v1255
        %1258 = vrot.lane.b32.xlu0 %v1256, 32
        %v1259 = vpop.permute.xlu0 %1258
        %v1261 = vmul.f32 %v1239, %v1259
        %v1262 = vsel %vm803, 5, 2
        %v1263 = vlaneseq
        %v1264 = vshrl.u32 %v1263, 7
        %v1265 = vsub.s32 0, %v1264
        %v1266 = vrot.slane %v1262, %v1265
        %vm1267 = vcmp.lt.s32.totalorder %v1266, %v811
        %1269 = vrot.lane.b32.xlu0 %v1261, 64
        %v1270 = vpop.permute.xlu0 %1269
        %v1272 = vsel %vm1267, %v1270, %v1181
        %1274 = vrot.lane.b32.xlu0 %v1255, 96
        %v1275 = vpop.permute.xlu0 %1274
        %v1277 = vsel %vm1267, %v1275, %v1186
        %v1278 = vld [vmem:[%s666] sm:$0xf]
        %v1279 = vpack.c.bf16 %v1272, %v1272
        %v1281 = vsel %vm334, %v1279, 0
        %1283 = vmatprep.subr.bf16.mxu0 0
        %1284 = vmatpush1.bf16.msra.mxu0 %v730
        %1285 = vmatprep.subr.bf16.mxu0 0
        %1286 = vmatpush1.bf16.msra.mxu0 %v731
        %1287 = vmatprep.subr.bf16.mxu0 0
        %1288 = vmatpush1.bf16.msra.mxu0 0
        %1289 = vmatprep.subr.bf16.mxu0 0
        %1290 = vmatpush1.bf16.msra.mxu0 0
        %1291 = vmatprep.subr.bf16.mxu0 0
        %1292 = vmatpush1.bf16.msra.mxu0 0
        %1293 = vmatprep.subr.bf16.mxu0 0
        %1294 = vmatpush1.bf16.msra.mxu0 0
        %1295 = vmatprep.subr.bf16.mxu0 0
        %1296 = vmatpush1.bf16.msra.mxu0 0
        %1297 = vmatprep.subr.bf16.mxu0 0
        %1298 = vmatpush1.bf16.msra.mxu0 0
        %1299 = vmatprep.subr.bf16.mxu0 0
        %1300 = vmatpush1.bf16.msra.mxu0 0
        %1301 = vmatprep.subr.bf16.mxu0 0
        %1302 = vmatpush1.bf16.msra.mxu0 0
        %1303 = vmatprep.subr.bf16.mxu0 0
        %1304 = vmatpush1.bf16.msra.mxu0 0
        %1305 = vmatprep.subr.bf16.mxu0 0
        %1306 = vmatpush1.bf16.msra.mxu0 0
        %1307 = vmatprep.subr.bf16.mxu0 0
        %1308 = vmatpush1.bf16.msra.mxu0 0
        %1309 = vmatprep.subr.bf16.mxu0 0
        %1310 = vmatpush1.bf16.msra.mxu0 0
        %1311 = vmatprep.subr.bf16.mxu0 0
        %1312 = vmatpush1.bf16.msra.mxu0 0
        %1313 = vmatprep.subr.bf16.mxu0 0
        %1314 = vmatpush1.bf16.msra.mxu0 0
        %1315 = vmatprep.mubr.bf16.mxu0 0
        %1316 = vmatmul.mubr.bf16.gmra.mrb[0].mxu0 %v1281
        %v1317 = vpop.f32.mrb[0].mxu0
        %v1318 = vadd.f32 0.0, %v1317
        %v1319 = vpop.f32.mrb[0].mxu0
        %v1320 = vpop.f32.mrb[0].mxu0
        %v1321 = vpop.f32.mrb[0].mxu0
        %1322 = vdwg.mxu0
        %v1323 = vunpack.c.l.bf16 %v1278
        %v1324 = vadd.f32 %v1323, %v1318
        %v1325 = vxor.u32 %v1324, 2147483648
        %v1326 = vmul.f32 %v1325, 1.442695
        %v1327 = vpow.pop %v1326
        %v1328 = vadd.f32 %v1327, 1.0
        %v1329 = vrcp.pop %v1328
        %v1330 = vmul.f32 1.0, %v1329
        %v1331 = vtanh.pop %v1324
        %1333 = vrot.lane.b32.xlu0 %v1277, 32
        %v1334 = vpop.permute.xlu0 %1333
        %v1336 = vmul.f32 %v1330, %v1334
        %1338 = vrot.lane.b32.xlu0 %v1331, 32
        %v1339 = vpop.permute.xlu0 %1338
        %v1341 = vmul.f32 %v1330, %v1339
        %1343 = vrot.lane.b32.xlu0 %v1341, 32
        %v1344 = vpop.permute.xlu0 %1343
        %v1346 = vadd.f32 %v1336, %v1344
        %v1347 = vtanh.pop %v1346
        %1349 = vrot.lane.b32.xlu0 %v1347, 32
        %v1350 = vpop.permute.xlu0 %1349
        %v1352 = vmul.f32 %v1330, %v1350
        %v1353 = vsel %vm803, 6, 1
        %v1354 = vlaneseq
        %v1355 = vshrl.u32 %v1354, 7
        %v1356 = vsub.s32 0, %v1355
        %v1357 = vrot.slane %v1353, %v1356
        %vm1358 = vcmp.lt.s32.totalorder %v1357, %v811
        %1360 = vrot.lane.b32.xlu0 %v1352, 64
        %v1361 = vpop.permute.xlu0 %1360
        %v1363 = vsel %vm1358, %v1361, %v1272
        %1365 = vrot.lane.b32.xlu0 %v1346, 96
        %v1366 = vpop.permute.xlu0 %1365
        %v1368 = vsel %vm1358, %v1366, %v1277
        %v1369 = vld [vmem:[%s714] sm:$0xf]
        %v1370 = vpack.c.bf16 %v1363, %v1363
        %v1372 = vsel %vm334, %v1370, 0
        %1374 = vmatprep.subr.bf16.mxu0 0
        %1375 = vmatpush1.bf16.msra.mxu0 %v730
        %1376 = vmatprep.subr.bf16.mxu0 0
        %1377 = vmatpush1.bf16.msra.mxu0 %v731
        %1378 = vmatprep.subr.bf16.mxu0 0
        %1379 = vmatpush1.bf16.msra.mxu0 0
        %1380 = vmatprep.subr.bf16.mxu0 0
        %1381 = vmatpush1.bf16.msra.mxu0 0
        %1382 = vmatprep.subr.bf16.mxu0 0
        %1383 = vmatpush1.bf16.msra.mxu0 0
        %1384 = vmatprep.subr.bf16.mxu0 0
        %1385 = vmatpush1.bf16.msra.mxu0 0
        %1386 = vmatprep.subr.bf16.mxu0 0
        %1387 = vmatpush1.bf16.msra.mxu0 0
        %1388 = vmatprep.subr.bf16.mxu0 0
        %1389 = vmatpush1.bf16.msra.mxu0 0
        %1390 = vmatprep.subr.bf16.mxu0 0
        %1391 = vmatpush1.bf16.msra.mxu0 0
        %1392 = vmatprep.subr.bf16.mxu0 0
        %1393 = vmatpush1.bf16.msra.mxu0 0
        %1394 = vmatprep.subr.bf16.mxu0 0
        %1395 = vmatpush1.bf16.msra.mxu0 0
        %1396 = vmatprep.subr.bf16.mxu0 0
        %1397 = vmatpush1.bf16.msra.mxu0 0
        %1398 = vmatprep.subr.bf16.mxu0 0
        %1399 = vmatpush1.bf16.msra.mxu0 0
        %1400 = vmatprep.subr.bf16.mxu0 0
        %1401 = vmatpush1.bf16.msra.mxu0 0
        %1402 = vmatprep.subr.bf16.mxu0 0
        %1403 = vmatpush1.bf16.msra.mxu0 0
        %1404 = vmatprep.subr.bf16.mxu0 0
        %1405 = vmatpush1.bf16.msra.mxu0 0
        %1406 = vmatprep.mubr.bf16.mxu0 0
        %1407 = vmatmul.mubr.bf16.gmra.mrb[0].mxu0 %v1372
        %v1408 = vpop.f32.mrb[0].mxu0
        %v1409 = vadd.f32 0.0, %v1408
        %v1410 = vpop.f32.mrb[0].mxu0
        %v1411 = vpop.f32.mrb[0].mxu0
        %v1412 = vpop.f32.mrb[0].mxu0
        %1413 = vdwg.mxu0
        %v1414 = vunpack.c.l.bf16 %v1369
        %v1415 = vadd.f32 %v1414, %v1409
        %v1416 = vxor.u32 %v1415, 2147483648
        %v1417 = vmul.f32 %v1416, 1.442695
        %v1418 = vpow.pop %v1417
        %v1419 = vadd.f32 %v1418, 1.0
        %v1420 = vrcp.pop %v1419
        %v1421 = vmul.f32 1.0, %v1420
        %v1422 = vtanh.pop %v1415
        %1424 = vrot.lane.b32.xlu0 %v1368, 32
        %v1425 = vpop.permute.xlu0 %1424
        %v1427 = vmul.f32 %v1421, %v1425
        %1429 = vrot.lane.b32.xlu0 %v1422, 32
        %v1430 = vpop.permute.xlu0 %1429
        %v1432 = vmul.f32 %v1421, %v1430
        %1434 = vrot.lane.b32.xlu0 %v1432, 32
        %v1435 = vpop.permute.xlu0 %1434
        %v1437 = vadd.f32 %v1427, %v1435
        %v1438 = vtanh.pop %v1437
        %1440 = vrot.lane.b32.xlu0 %v1438, 32
        %v1441 = vpop.permute.xlu0 %1440
        %v1443 = vmul.f32 %v1421, %v1441
        %v1444 = vsel %vm803, 7, 0
        %v1445 = vlaneseq
        %v1446 = vshrl.u32 %v1445, 7
        %v1447 = vsub.s32 0, %v1446
        %v1448 = vrot.slane %v1444, %v1447
        %vm1449 = vcmp.lt.s32.totalorder %v1448, %v811
        %1451 = vrot.lane.b32.xlu0 %v1443, 64
        %v1452 = vpop.permute.xlu0 %1451
        %v1454 = vsel %vm1449, %v1452, %v1363
        %1455 = vst.msk [vmem:[%s304] sm:$0xff] %vm334, %v1454
        %s1456 = sand.u32 %s142, 1
        %s1457 = scalar_lea.sflag [#allocation5], %s1456
        %s1458 = sand.u32 %s142, 1
        %s1459 = smul.addr %s1458, 8
        %s1460 = scalar_lea.vmem [#allocation4], %s1459
        // Predicated region
        $region82: #{char_lstm_encoding.1} parent=76 // pred_check
          %p1461 = pneg %p152
        $region83: #{char_lstm_encoding.1} parent=76 // pred_check_branch
          %1463 = sbr.rel (%p1461) target = $region85
        $region84: #{char_lstm_encoding.1} parent=76 // pred_region
          %s1465 = ssub.s32 128, 128
          %1466 = vsyncadd %s1457, %s1465
          %s1467 = smul.addr %s19, 128
          %s1468 = scalar_lea.hbm %s5, %s1467
          %s1470 = sshll.u32 %s1460, 4
          %s1471 = int_to_ptr.vmem [resolvable:$true] %s1470
          %1473 = dma.vmem_to_hbm [thread:$0]  %s1471, 128, %s1468, %s1457
        $region85: #{char_lstm_encoding.1} parent=76 // pred_fallthru
          _
      $region77: #{char_lstm_encoding.1} parent=5 // pred_fallthru
        _
      %p1474 = scmp.le.s32.totalorder 2, %s14
      // Predicated region
      $region86: #{char_lstm_encoding.1} parent=5 // pred_check
        %p1475 = pneg %p1474
      $region87: #{char_lstm_encoding.1} parent=5 // pred_check_branch
        %1477 = sbr.rel (%p1475) target = $region89
      $region88: #{char_lstm_encoding.1} parent=5 // pred_region
        %s1478 = ssub.s32 %s14, 2
        // Predicated region
        $region90: #{char_lstm_encoding.1} parent=88 // pred_check
          %p1479 = pneg %p158
        $region91: #{char_lstm_encoding.1} parent=88 // pred_check_branch
          %1481 = sbr.rel (%p1479) target = $region93
        $region92: #{char_lstm_encoding.1} parent=88 // pred_region
          %s1482 = sand.u32 %s143, 1
          %s1483 = scalar_lea.sflag [#allocation5], %s1482
          %s1484 = sand.u32 %s143, 1
          %s1485 = smul.addr %s1484, 8
          %s1486 = scalar_lea.vmem [#allocation4], %s1485
          %1487 = dma.done %s1483, 128
        $region93: #{char_lstm_encoding.1} parent=88 // pred_fallthru
          _
      $region89: #{char_lstm_encoding.1} parent=5 // pred_fallthru
        _
    $region6: #{char_lstm_encoding.1} parent=1 // loop_footer
      %s18 = sadd.s32 1, %s14
    $region7: #{char_lstm_encoding.1} parent=1 // loop_footer_branch
      %13 = sbr.rel target = $region3
    $region8: #{char_lstm_encoding.1} parent=1 // loop_exit
      _
    %1488 = vsyncpa [#allocation5], 1
    %s1489 = scalar_lea.sflag [#allocation5], 1
    %1490 = vsyncpa %s1489, 1

</llo_original>
